<compile_context>
chip_gen: v5e
topology: v5e:2x2
jax: 0.10.0
libtpu: 0.0.40
codegen_flags: <defaults>
</compile_context>

<pallas_src>
import jax
import jax.numpy as jnp
from jax.experimental import pallas as pl
from jax.experimental.pallas import tpu as pltpu

# --------------------------- synthetic BERT config ---------------------------
VOCAB = 100
TYPE_VOCAB = 2
SEQ = 8
BATCH = 2
HIDDEN = 32
NUM_HEADS = 2
HEAD_DIM = HIDDEN // NUM_HEADS
INTERMEDIATE = 64
NUM_LAYERS = 2
LN_EPS = 1e-12
NUM_CLASSES = 2

QKV_PAD = 128          # lane-dense fused-QKV output width (3H=96 real + pad)
OUT_PAD = 128          # lane-dense padded logits width
B_PAD = 8              # sublane-dense padded logits batch rows
NP_ROWS = 8            # packed per-layer small-param rows


# ------------------------------ kernel helpers --------------------------------
def _layernorm(x, g, b, eps=LN_EPS):
    mu = jnp.mean(x, axis=-1, keepdims=True)
    var = jnp.mean((x - mu) ** 2, axis=-1, keepdims=True)
    return (x - mu) * jax.lax.rsqrt(var + eps) * g + b


def _gelu(x):
    # TODO(synk): HF BERT uses exact erf-based GELU; tanh approximation used here.
    return 0.5 * x * (1.0 + jnp.tanh(0.7978845608028654 * (x + 0.044715 * x * x * x)))


# ------------------------- fully fused SentenceBERT kernel --------------------
def sbert_fused_kernel(x_ref, bias_ref, wqkv_ref, wo_ref, w1_ref, w2_ref,
                       pvec_ref, fcwb_ref, out_ref):
    """Whole forward pass for both sentences of the whole batch.

    x_ref:    [R, H]        embedded (post-LN) tokens, R = 2*B*S rows
    bias_ref: [R, R]        block-diagonal attention bias (0 / -1e9):
                            same sentence AND key not padded
    wqkv_ref: [L, H, 128]   bf16, q|k|v packed + zero pad lanes
    wo_ref:   [L, H, H]     bf16
    w1_ref:   [L, H, I]     bf16
    w2_ref:   [L, I, H]     bf16
    pvec_ref: [L, 8, 128]   packed small params:
                            rows = bqkv | bo | ln1g | ln1b | b1 | b2 | ln2g | ln2b
    fcwb_ref: [3H+8, 128]   final Linear weight (rows 0..3H-1) + bias (row 3H)
    out_ref:  [8, 128]      sublane/lane-dense logits slab (real logits in
                            rows 0..B-1, lanes 0..1)
    """
    H, HD, I = HIDDEN, HEAD_DIM, INTERMEDIATE
    R = x_ref.shape[0]
    NS = R // SEQ
    B = NS // 2
    scale = 1.0 / (HD ** 0.5)

    x = x_ref[...]                       # [R, H] f32
    bias = bias_ref[...]                 # [R, R] f32

    first = None
    for layer in range(NUM_LAYERS):      # static unroll; everything stays in VMEM
        pv = pvec_ref[layer]             # [8, 128] packed small params (f32)
        wo_l = wo_ref[layer]             # [H, H] bf16

        # ---- fused QKV projection: one lane-dense [R,H]x[H,128] bf16 push ----
        qkv = (jnp.dot(x.astype(jnp.bfloat16), wqkv_ref[layer],
                       preferred_element_type=jnp.float32)
               + pv[0:1, :])                                        # [R, 128] f32

        # ---- attention: batch folded into rows via block-diagonal bias;
        # ---- per-head context folded straight into the output projection ----
        attn = pv[1:2, :H]                                          # out-proj bias
        for h in range(NUM_HEADS):                                  # static, 2 heads
            qh = qkv[:, h * HD:(h + 1) * HD]                        # [R, HD] f32
            kh = qkv[:, H + h * HD:H + (h + 1) * HD]
            vh = qkv[:, 2 * H + h * HD:2 * H + (h + 1) * HD]
            scores = jax.lax.dot_general(                           # q @ k^T  [R, R]
                qh, kh, (((1,), (1,)), ((), ())),
                preferred_element_type=jnp.float32) * scale + bias
            # No row-max subtraction: scores are bounded and masked entries hold
            # -1e9, whose exp underflows to exactly 0 (skips an XLU reduce/row).
            p = jnp.exp(scores)
            p = p * pl.reciprocal(jnp.sum(p, axis=-1, keepdims=True), approx=True)
            ctx_h = jnp.dot(p, vh, preferred_element_type=jnp.float32)      # [R, HD]
            attn = attn + jnp.dot(ctx_h.astype(jnp.bfloat16),
                                  wo_l[h * HD:(h + 1) * HD, :],
                                  preferred_element_type=jnp.float32)       # [R, H]

        x1 = _layernorm(x + attn, pv[2:3, :H], pv[3:4, :H])

        # ---- FFN + residual + LN (bf16 matmul operands, f32 elementwise) -----
        h1 = _gelu(jnp.dot(x1.astype(jnp.bfloat16), w1_ref[layer],
                           preferred_element_type=jnp.float32) + pv[4:5, :I])
        h2 = (jnp.dot(h1.astype(jnp.bfloat16), w2_ref[layer],
                      preferred_element_type=jnp.float32) + pv[5:6, :H])
        x = _layernorm(x1 + h2, pv[6:7, :H], pv[7:8, :H])

        if layer == 0:
            first = x                    # hidden_states[1] = first encoder layer out

    last = x                             # hidden_states[-1]

    # ---- first-last-avg pooling (unmasked mean over seq, like the reference) -
    avg_first = jnp.mean(first.reshape(NS, SEQ, H), axis=1)         # [NS, H]
    avg_last = jnp.mean(last.reshape(NS, SEQ, H), axis=1)
    pooled = 0.5 * (avg_first + avg_last)

    # ---- cross features + final Linear, decomposed (no [u,v,|u-v|] concat) ---
    u = pooled[0:B]                      # sentence-1 pooled vectors
    w = pooled[B:NS]                     # sentence-2 pooled vectors
    fcwb = fcwb_ref[...]                 # [3H+8, 128]
    logits = (jnp.dot(u, fcwb[0:H], preferred_element_type=jnp.float32)
              + jnp.dot(w, fcwb[H:2 * H], preferred_element_type=jnp.float32)
              + jnp.dot(jnp.abs(u - w), fcwb[2 * H:3 * H],
                        preferred_element_type=jnp.float32)
              + fcwb[3 * H:3 * H + 1])                               # [B, 128]

    # sublane/lane-dense store: pad the batch rows to 8 so this is one unmasked vst
    out_ref[...] = jnp.concatenate(
        [logits, jnp.zeros((out_ref.shape[0] - B, OUT_PAD), jnp.float32)], axis=0)


# ------------------------------ model (glue) ----------------------------------
def bert_embeddings(params, input_ids):
    """Embedding lookup + LayerNorm (token-id gather stays in plain JAX)."""
    _, S = input_ids.shape
    emb = (params["word_emb"][input_ids]
           + params["pos_emb"][None, :S, :]
           + params["type_emb"][0][None, None, :])
    mu = jnp.mean(emb, axis=-1, keepdims=True)
    var = jnp.mean((emb - mu) ** 2, axis=-1, keepdims=True)
    return (emb - mu) * jax.lax.rsqrt(var + LN_EPS) * params["emb_ln_g"] + params["emb_ln_b"]


def sentence_bert_forward(params, ids1, mask1, ids2, mask2):
    B = ids1.shape[0]
    # Run both sentences through the encoder in one pass (concat along batch).
    ids = jnp.concatenate([ids1, ids2], axis=0)                       # [2B, S]
    mask = jnp.concatenate([mask1, mask2], axis=0)                    # [2B, S]
    x = bert_embeddings(params, ids)                                  # [2B, S, H]
    NS, S, H = x.shape
    R = NS * S
    x_flat = x.reshape(R, H)                                          # [R, H]

    # Block-diagonal attention bias: token i may attend token j iff they are in
    # the same sentence AND token j is not padding (HF BERT masks keys only).
    sent = jnp.repeat(jnp.arange(NS, dtype=jnp.int32), S)             # [R]
    key_ok = mask.reshape(R) > 0                                      # [R]
    allowed = (sent[:, None] == sent[None, :]) & key_ok[None, :]
    bias_full = jnp.where(allowed, 0.0, -1e9).astype(jnp.float32)     # [R, R]

    operands = (x_flat, bias_full,
                params["wqkv"], params["wo"], params["w1"], params["w2"],
                params["pvec"], params["fcwb"])

    # Advisory cost hint so XLA schedules correctly around the single launch.
    per_layer_flops = (2 * R * HIDDEN * QKV_PAD
                       + NUM_HEADS * (2 * R * R * HEAD_DIM       # q k^T
                                      + 2 * R * R * HEAD_DIM     # p v
                                      + 2 * R * HEAD_DIM * HIDDEN)   # ctx wo_h
                       + 2 * R * HIDDEN * INTERMEDIATE
                       + 2 * R * INTERMEDIATE * HIDDEN)
    flops = NUM_LAYERS * per_layer_flops + 3 * 2 * B * HIDDEN * OUT_PAD
    transcendentals = NUM_LAYERS * (NUM_HEADS * R * R      # exp
                                    + R * INTERMEDIATE     # tanh (gelu)
                                    + 4 * R)               # rsqrt / reciprocal
    bytes_accessed = (sum(int(a.size) * a.dtype.itemsize for a in operands)
                      + B_PAD * OUT_PAD * 4)

    out_pad = pl.pallas_call(
        sbert_fused_kernel,
        out_shape=jax.ShapeDtypeStruct((B_PAD, OUT_PAD), jnp.float32),
        in_specs=[pl.BlockSpec(memory_space=pltpu.MemorySpace.VMEM)] * len(operands),
        out_specs=pl.BlockSpec(memory_space=pltpu.MemorySpace.VMEM),
        cost_estimate=pl.CostEstimate(flops=int(flops),
                                      transcendentals=int(transcendentals),
                                      bytes_accessed=int(bytes_accessed)),
    )(*operands)

    return out_pad[:B, :NUM_CLASSES]                                  # [B, 2]


# ------------------------------ parameter init ---------------------------------
def init_params(key):
    def nrm(k, shape, scale=0.02):
        return (scale * jax.random.normal(k, shape)).astype(jnp.float32)

    L, H, I = NUM_LAYERS, HIDDEN, INTERMEDIATE
    keys = jax.random.split(key, 13)
    params = {
        "word_emb": nrm(keys[0], (VOCAB, H)),
        "pos_emb": nrm(keys[1], (SEQ, H)),
        "type_emb": nrm(keys[2], (TYPE_VOCAB, H)),
        "emb_ln_g": jnp.ones((1, H), jnp.float32),
        "emb_ln_b": jnp.zeros((1, H), jnp.float32),
    }

    # Big matmul weights stored in bf16 (MXU-native on v5e/v6e/v7x); fused QKV
    # packed q|k|v and zero-padded to 128 output lanes for a lane-dense matmul.
    wqkv = nrm(keys[3], (L, H, 3 * H))
    wqkv_pad = jnp.zeros((L, H, QKV_PAD), jnp.float32).at[:, :, :3 * H].set(wqkv)
    params["wqkv"] = wqkv_pad.astype(jnp.bfloat16)
    params["wo"] = nrm(keys[4], (L, H, H)).astype(jnp.bfloat16)
    params["w1"] = nrm(keys[5], (L, H, I)).astype(jnp.bfloat16)
    params["w2"] = nrm(keys[6], (L, I, H)).astype(jnp.bfloat16)

    # All tiny per-layer params packed into ONE lane-dense [L, 8, 128] slab
    # (row layout: bqkv | bo | ln1g | ln1b | b1 | b2 | ln2g | ln2b).
    bqkv = nrm(keys[7], (L, 3 * H), scale=0.01)
    bo = nrm(keys[8], (L, H), scale=0.01)
    b1 = nrm(keys[9], (L, I), scale=0.01)
    b2 = nrm(keys[10], (L, H), scale=0.01)
    pvec = jnp.zeros((L, NP_ROWS, 128), jnp.float32)
    pvec = pvec.at[:, 0, :3 * H].set(bqkv)
    pvec = pvec.at[:, 1, :H].set(bo)
    pvec = pvec.at[:, 2, :H].set(1.0)          # ln1 gamma (beta = row 3 = zeros)
    pvec = pvec.at[:, 4, :I].set(b1)
    pvec = pvec.at[:, 5, :H].set(b2)
    pvec = pvec.at[:, 6, :H].set(1.0)          # ln2 gamma (beta = row 7 = zeros)
    params["pvec"] = pvec

    # nn.Linear(3H, 2): weight pre-transposed to [3H, 2], zero-padded to 128
    # lanes, with the bias appended as row 3H -> one lane-dense slab, one DMA.
    fc_w = nrm(keys[11], (3 * H, NUM_CLASSES))
    fc_b = nrm(keys[12], (NUM_CLASSES,), scale=0.01)
    fcwb = jnp.zeros((3 * H + NP_ROWS, OUT_PAD), jnp.float32)
    fcwb = fcwb.at[:3 * H, :NUM_CLASSES].set(fc_w)
    fcwb = fcwb.at[3 * H, :NUM_CLASSES].set(fc_b)
    params["fcwb"] = fcwb
    return params


# ----------------------------------- main --------------------------------------
if __name__ == "__main__":
    key = jax.random.PRNGKey(0)
    k_params, k_ids1, k_ids2 = jax.random.split(key, 3)

    params = init_params(k_params)

    input_ids1 = jax.random.randint(k_ids1, (BATCH, SEQ), 1, VOCAB, dtype=jnp.int32)
    input_ids2 = jax.random.randint(k_ids2, (BATCH, SEQ), 1, VOCAB, dtype=jnp.int32)
    # attention masks with some trailing padding (like real tokenizer output)
    pos = jnp.arange(SEQ)[None, :]
    attention_mask1 = (pos < jnp.array([[SEQ], [SEQ - 3]])).astype(jnp.int32)
    attention_mask2 = (pos < jnp.array([[SEQ - 2], [SEQ]])).astype(jnp.int32)

    fwd = jax.jit(sentence_bert_forward)
    out = fwd(params, input_ids1, attention_mask1, input_ids2, attention_mask2)
    out = jax.block_until_ready(out)

    assert out.shape == (BATCH, NUM_CLASSES) and out.dtype == jnp.float32
    assert bool(jnp.all(jnp.isfinite(out)))
    print("KERNEL_OK")
</pallas_src>

<mosaic_0001>
module attributes {stable_mosaic.version = 11 : i64} {
  func.func @sbert_fused_kernel(%arg0: memref<32x32xf32, #tpu.memory_space<vmem>>, %arg1: memref<32x32xf32, #tpu.memory_space<vmem>>, %arg2: memref<2x32x128xbf16, #tpu.memory_space<vmem>>, %arg3: memref<2x32x32xbf16, #tpu.memory_space<vmem>>, %arg4: memref<2x32x64xbf16, #tpu.memory_space<vmem>>, %arg5: memref<2x64x32xbf16, #tpu.memory_space<vmem>>, %arg6: memref<2x8x128xf32, #tpu.memory_space<vmem>>, %arg7: memref<104x128xf32, #tpu.memory_space<vmem>>, %arg8: memref<8x128xf32, #tpu.memory_space<vmem>>) attributes {dimension_semantics = [], scalar_prefetch = 0 : i64, scratch_operands = 0 : i64, tpu.core_type = #tpu.core_type<tc>} {
    %c0 = arith.constant 0 : index
    %c0_0 = arith.constant 0 : index
    %0 = vector.load %arg0[%c0, %c0_0] : memref<32x32xf32, #tpu.memory_space<vmem>>, vector<32x32xf32>
    %c0_1 = arith.constant 0 : index
    %c0_2 = arith.constant 0 : index
    %1 = vector.load %arg1[%c0_1, %c0_2] : memref<32x32xf32, #tpu.memory_space<vmem>>, vector<32x32xf32>
    %c0_3 = arith.constant 0 : index
    %c0_4 = arith.constant 0 : index
    %c0_5 = arith.constant 0 : index
    %2 = vector.load %arg6[%c0_3, %c0_4, %c0_5] : memref<2x8x128xf32, #tpu.memory_space<vmem>>, vector<1x8x128xf32>
    %3 = vector.shape_cast %2 : vector<1x8x128xf32> to vector<8x128xf32>
    %c0_6 = arith.constant 0 : index
    %c0_7 = arith.constant 0 : index
    %c0_8 = arith.constant 0 : index
    %4 = vector.load %arg3[%c0_6, %c0_7, %c0_8] : memref<2x32x32xbf16, #tpu.memory_space<vmem>>, vector<1x32x32xbf16>
    %5 = vector.shape_cast %4 : vector<1x32x32xbf16> to vector<32x32xbf16>
    %6 = arith.truncf %0 : vector<32x32xf32> to vector<32x32xbf16>
    %c0_9 = arith.constant 0 : index
    %c0_10 = arith.constant 0 : index
    %c0_11 = arith.constant 0 : index
    %7 = vector.load %arg2[%c0_9, %c0_10, %c0_11] : memref<2x32x128xbf16, #tpu.memory_space<vmem>>, vector<1x32x128xbf16>
    %8 = vector.shape_cast %7 : vector<1x32x128xbf16> to vector<32x128xbf16>
    %cst = arith.constant dense<0.000000e+00> : vector<32x128xf32>
    %9 = tpu.matmul %6, %8, %cst {dimension_numbers = #tpu.dot_dimension_numbers<[1], [0], [0], [1], [0, 0, 1, 1], [], []>} : vector<32x32xbf16>, vector<32x128xbf16>, vector<32x128xf32> -> vector<32x128xf32>
    %10 = vector.extract_strided_slice %3 {offsets = [0, 0], sizes = [1, 128], strides = [1, 1]} : vector<8x128xf32> to vector<1x128xf32>
    %11 = vector.broadcast %10 : vector<1x128xf32> to vector<32x128xf32>
    %12 = arith.addf %9, %11 : vector<32x128xf32>
    %13 = vector.extract_strided_slice %3 {offsets = [1, 0], sizes = [1, 32], strides = [1, 1]} : vector<8x128xf32> to vector<1x32xf32>
    %14 = vector.extract_strided_slice %12 {offsets = [0, 0], sizes = [32, 16], strides = [1, 1]} : vector<32x128xf32> to vector<32x16xf32>
    %15 = vector.extract_strided_slice %12 {offsets = [0, 32], sizes = [32, 16], strides = [1, 1]} : vector<32x128xf32> to vector<32x16xf32>
    %16 = vector.extract_strided_slice %12 {offsets = [0, 64], sizes = [32, 16], strides = [1, 1]} : vector<32x128xf32> to vector<32x16xf32>
    %cst_12 = arith.constant dense<0.000000e+00> : vector<32x32xf32>
    %17 = tpu.matmul %14, %15, %cst_12 {dimension_numbers = #tpu.dot_dimension_numbers<[1], [1], [0], [0], [0, 0, 1, 0], [], []>} : vector<32x16xf32>, vector<32x16xf32>, vector<32x32xf32> -> vector<32x32xf32>
    %cst_13 = arith.constant 2.500000e-01 : f32
    %18 = vector.broadcast %cst_13 : f32 to vector<32x32xf32>
    %19 = arith.mulf %17, %18 : vector<32x32xf32>
    %20 = arith.addf %19, %1 : vector<32x32xf32>
    %21 = math.exp %20 : vector<32x32xf32>
    %cst_14 = arith.constant dense<0.000000e+00> : vector<32xf32>
    %22 = vector.multi_reduction <add>, %21, %cst_14 [1] : vector<32x32xf32> to vector<32xf32>
    %23 = vector.shape_cast %22 : vector<32xf32> to vector<32x1xf32>
    %24 = tpu.reciprocal %23 {approx = true} : vector<32x1xf32> -> vector<32x1xf32>
    %25 = vector.broadcast %24 : vector<32x1xf32> to vector<32x32xf32>
    %26 = arith.mulf %21, %25 : vector<32x32xf32>
    %cst_15 = arith.constant dense<0.000000e+00> : vector<32x16xf32>
    %27 = tpu.matmul %26, %16, %cst_15 {dimension_numbers = #tpu.dot_dimension_numbers<[1], [0], [0], [1], [0, 0, 1, 1], [], []>} : vector<32x32xf32>, vector<32x16xf32>, vector<32x16xf32> -> vector<32x16xf32>
    %28 = arith.truncf %27 : vector<32x16xf32> to vector<32x16xbf16>
    %29 = vector.extract_strided_slice %5 {offsets = [0, 0], sizes = [16, 32], strides = [1, 1]} : vector<32x32xbf16> to vector<16x32xbf16>
    %cst_16 = arith.constant dense<0.000000e+00> : vector<32x32xf32>
    %30 = tpu.matmul %28, %29, %cst_16 {dimension_numbers = #tpu.dot_dimension_numbers<[1], [0], [0], [1], [0, 0, 1, 1], [], []>} : vector<32x16xbf16>, vector<16x32xbf16>, vector<32x32xf32> -> vector<32x32xf32>
    %31 = vector.broadcast %13 : vector<1x32xf32> to vector<32x32xf32>
    %32 = arith.addf %31, %30 : vector<32x32xf32>
    %33 = vector.extract_strided_slice %12 {offsets = [0, 16], sizes = [32, 16], strides = [1, 1]} : vector<32x128xf32> to vector<32x16xf32>
    %34 = vector.extract_strided_slice %12 {offsets = [0, 48], sizes = [32, 16], strides = [1, 1]} : vector<32x128xf32> to vector<32x16xf32>
    %35 = vector.extract_strided_slice %12 {offsets = [0, 80], sizes = [32, 16], strides = [1, 1]} : vector<32x128xf32> to vector<32x16xf32>
    %cst_17 = arith.constant dense<0.000000e+00> : vector<32x32xf32>
    %36 = tpu.matmul %33, %34, %cst_17 {dimension_numbers = #tpu.dot_dimension_numbers<[1], [1], [0], [0], [0, 0, 1, 0], [], []>} : vector<32x16xf32>, vector<32x16xf32>, vector<32x32xf32> -> vector<32x32xf32>
    %cst_18 = arith.constant 2.500000e-01 : f32
    %37 = vector.broadcast %cst_18 : f32 to vector<32x32xf32>
    %38 = arith.mulf %36, %37 : vector<32x32xf32>
    %39 = arith.addf %38, %1 : vector<32x32xf32>
    %40 = math.exp %39 : vector<32x32xf32>
    %cst_19 = arith.constant dense<0.000000e+00> : vector<32xf32>
    %41 = vector.multi_reduction <add>, %40, %cst_19 [1] : vector<32x32xf32> to vector<32xf32>
    %42 = vector.shape_cast %41 : vector<32xf32> to vector<32x1xf32>
    %43 = tpu.reciprocal %42 {approx = true} : vector<32x1xf32> -> vector<32x1xf32>
    %44 = vector.broadcast %43 : vector<32x1xf32> to vector<32x32xf32>
    %45 = arith.mulf %40, %44 : vector<32x32xf32>
    %cst_20 = arith.constant dense<0.000000e+00> : vector<32x16xf32>
    %46 = tpu.matmul %45, %35, %cst_20 {dimension_numbers = #tpu.dot_dimension_numbers<[1], [0], [0], [1], [0, 0, 1, 1], [], []>} : vector<32x32xf32>, vector<32x16xf32>, vector<32x16xf32> -> vector<32x16xf32>
    %47 = arith.truncf %46 : vector<32x16xf32> to vector<32x16xbf16>
    %48 = vector.extract_strided_slice %5 {offsets = [16, 0], sizes = [16, 32], strides = [1, 1]} : vector<32x32xbf16> to vector<16x32xbf16>
    %cst_21 = arith.constant dense<0.000000e+00> : vector<32x32xf32>
    %49 = tpu.matmul %47, %48, %cst_21 {dimension_numbers = #tpu.dot_dimension_numbers<[1], [0], [0], [1], [0, 0, 1, 1], [], []>} : vector<32x16xbf16>, vector<16x32xbf16>, vector<32x32xf32> -> vector<32x32xf32>
    %50 = arith.addf %32, %49 : vector<32x32xf32>
    %51 = arith.addf %0, %50 : vector<32x32xf32>
    %52 = vector.extract_strided_slice %3 {offsets = [2, 0], sizes = [1, 32], strides = [1, 1]} : vector<8x128xf32> to vector<1x32xf32>
    %53 = vector.extract_strided_slice %3 {offsets = [3, 0], sizes = [1, 32], strides = [1, 1]} : vector<8x128xf32> to vector<1x32xf32>
    %cst_22 = arith.constant dense<0.000000e+00> : vector<32xf32>
    %54 = vector.multi_reduction <add>, %51, %cst_22 [1] : vector<32x32xf32> to vector<32xf32>
    %55 = vector.shape_cast %54 : vector<32xf32> to vector<32x1xf32>
    %cst_23 = arith.constant 3.200000e+01 : f32
    %56 = vector.broadcast %cst_23 : f32 to vector<32x1xf32>
    %57 = arith.divf %55, %56 : vector<32x1xf32>
    %58 = vector.broadcast %57 : vector<32x1xf32> to vector<32x32xf32>
    %59 = arith.subf %51, %58 : vector<32x32xf32>
    %60 = arith.mulf %59, %59 : vector<32x32xf32>
    %cst_24 = arith.constant dense<0.000000e+00> : vector<32xf32>
    %61 = vector.multi_reduction <add>, %60, %cst_24 [1] : vector<32x32xf32> to vector<32xf32>
    %62 = vector.shape_cast %61 : vector<32xf32> to vector<32x1xf32>
    %cst_25 = arith.constant 3.200000e+01 : f32
    %63 = vector.broadcast %cst_25 : f32 to vector<32x1xf32>
    %64 = arith.divf %62, %63 : vector<32x1xf32>
    %65 = vector.broadcast %57 : vector<32x1xf32> to vector<32x32xf32>
    %66 = arith.subf %51, %65 : vector<32x32xf32>
    %cst_26 = arith.constant 9.99999996E-13 : f32
    %67 = vector.broadcast %cst_26 : f32 to vector<32x1xf32>
    %68 = arith.addf %64, %67 : vector<32x1xf32>
    %69 = math.rsqrt %68 : vector<32x1xf32>
    %70 = vector.broadcast %69 : vector<32x1xf32> to vector<32x32xf32>
    %71 = arith.mulf %66, %70 : vector<32x32xf32>
    %72 = vector.broadcast %52 : vector<1x32xf32> to vector<32x32xf32>
    %73 = arith.mulf %71, %72 : vector<32x32xf32>
    %74 = vector.broadcast %53 : vector<1x32xf32> to vector<32x32xf32>
    %75 = arith.addf %73, %74 : vector<32x32xf32>
    %76 = arith.truncf %75 : vector<32x32xf32> to vector<32x32xbf16>
    %c0_27 = arith.constant 0 : index
    %c0_28 = arith.constant 0 : index
    %c0_29 = arith.constant 0 : index
    %77 = vector.load %arg4[%c0_27, %c0_28, %c0_29] : memref<2x32x64xbf16, #tpu.memory_space<vmem>>, vector<1x32x64xbf16>
    %78 = vector.shape_cast %77 : vector<1x32x64xbf16> to vector<32x64xbf16>
    %cst_30 = arith.constant dense<0.000000e+00> : vector<32x64xf32>
    %79 = tpu.matmul %76, %78, %cst_30 {dimension_numbers = #tpu.dot_dimension_numbers<[1], [0], [0], [1], [0, 0, 1, 1], [], []>} : vector<32x32xbf16>, vector<32x64xbf16>, vector<32x64xf32> -> vector<32x64xf32>
    %80 = vector.extract_strided_slice %3 {offsets = [4, 0], sizes = [1, 64], strides = [1, 1]} : vector<8x128xf32> to vector<1x64xf32>
    %81 = vector.broadcast %80 : vector<1x64xf32> to vector<32x64xf32>
    %82 = arith.addf %79, %81 : vector<32x64xf32>
    %cst_31 = arith.constant 5.000000e-01 : f32
    %83 = vector.broadcast %cst_31 : f32 to vector<32x64xf32>
    %84 = arith.mulf %83, %82 : vector<32x64xf32>
    %cst_32 = arith.constant 4.471500e-02 : f32
    %85 = vector.broadcast %cst_32 : f32 to vector<32x64xf32>
    %86 = arith.mulf %85, %82 : vector<32x64xf32>
    %87 = arith.mulf %86, %82 : vector<32x64xf32>
    %88 = arith.mulf %87, %82 : vector<32x64xf32>
    %89 = arith.addf %82, %88 : vector<32x64xf32>
    %cst_33 = arith.constant 0.797884583 : f32
    %90 = vector.broadcast %cst_33 : f32 to vector<32x64xf32>
    %91 = arith.mulf %90, %89 : vector<32x64xf32>
    %92 = math.tanh %91 : vector<32x64xf32>
    %cst_34 = arith.constant 1.000000e+00 : f32
    %93 = vector.broadcast %cst_34 : f32 to vector<32x64xf32>
    %94 = arith.addf %93, %92 : vector<32x64xf32>
    %95 = arith.mulf %84, %94 : vector<32x64xf32>
    %96 = arith.truncf %95 : vector<32x64xf32> to vector<32x64xbf16>
    %c0_35 = arith.constant 0 : index
    %c0_36 = arith.constant 0 : index
    %c0_37 = arith.constant 0 : index
    %97 = vector.load %arg5[%c0_35, %c0_36, %c0_37] : memref<2x64x32xbf16, #tpu.memory_space<vmem>>, vector<1x64x32xbf16>
    %98 = vector.shape_cast %97 : vector<1x64x32xbf16> to vector<64x32xbf16>
    %cst_38 = arith.constant dense<0.000000e+00> : vector<32x32xf32>
    %99 = tpu.matmul %96, %98, %cst_38 {dimension_numbers = #tpu.dot_dimension_numbers<[1], [0], [0], [1], [0, 0, 1, 1], [], []>} : vector<32x64xbf16>, vector<64x32xbf16>, vector<32x32xf32> -> vector<32x32xf32>
    %100 = vector.extract_strided_slice %3 {offsets = [5, 0], sizes = [1, 32], strides = [1, 1]} : vector<8x128xf32> to vector<1x32xf32>
    %101 = vector.broadcast %100 : vector<1x32xf32> to vector<32x32xf32>
    %102 = arith.addf %99, %101 : vector<32x32xf32>
    %103 = arith.addf %75, %102 : vector<32x32xf32>
    %104 = vector.extract_strided_slice %3 {offsets = [6, 0], sizes = [1, 32], strides = [1, 1]} : vector<8x128xf32> to vector<1x32xf32>
    %105 = vector.extract_strided_slice %3 {offsets = [7, 0], sizes = [1, 32], strides = [1, 1]} : vector<8x128xf32> to vector<1x32xf32>
    %cst_39 = arith.constant dense<0.000000e+00> : vector<32xf32>
    %106 = vector.multi_reduction <add>, %103, %cst_39 [1] : vector<32x32xf32> to vector<32xf32>
    %107 = vector.shape_cast %106 : vector<32xf32> to vector<32x1xf32>
    %cst_40 = arith.constant 3.200000e+01 : f32
    %108 = vector.broadcast %cst_40 : f32 to vector<32x1xf32>
    %109 = arith.divf %107, %108 : vector<32x1xf32>
    %110 = vector.broadcast %109 : vector<32x1xf32> to vector<32x32xf32>
    %111 = arith.subf %103, %110 : vector<32x32xf32>
    %112 = arith.mulf %111, %111 : vector<32x32xf32>
    %cst_41 = arith.constant dense<0.000000e+00> : vector<32xf32>
    %113 = vector.multi_reduction <add>, %112, %cst_41 [1] : vector<32x32xf32> to vector<32xf32>
    %114 = vector.shape_cast %113 : vector<32xf32> to vector<32x1xf32>
    %cst_42 = arith.constant 3.200000e+01 : f32
    %115 = vector.broadcast %cst_42 : f32 to vector<32x1xf32>
    %116 = arith.divf %114, %115 : vector<32x1xf32>
    %117 = vector.broadcast %109 : vector<32x1xf32> to vector<32x32xf32>
    %118 = arith.subf %103, %117 : vector<32x32xf32>
    %cst_43 = arith.constant 9.99999996E-13 : f32
    %119 = vector.broadcast %cst_43 : f32 to vector<32x1xf32>
    %120 = arith.addf %116, %119 : vector<32x1xf32>
    %121 = math.rsqrt %120 : vector<32x1xf32>
    %122 = vector.broadcast %121 : vector<32x1xf32> to vector<32x32xf32>
    %123 = arith.mulf %118, %122 : vector<32x32xf32>
    %124 = vector.broadcast %104 : vector<1x32xf32> to vector<32x32xf32>
    %125 = arith.mulf %123, %124 : vector<32x32xf32>
    %126 = vector.broadcast %105 : vector<1x32xf32> to vector<32x32xf32>
    %127 = arith.addf %125, %126 : vector<32x32xf32>
    %c1 = arith.constant 1 : index
    %c0_44 = arith.constant 0 : index
    %c0_45 = arith.constant 0 : index
    %128 = vector.load %arg6[%c1, %c0_44, %c0_45] : memref<2x8x128xf32, #tpu.memory_space<vmem>>, vector<1x8x128xf32>
    %129 = vector.shape_cast %128 : vector<1x8x128xf32> to vector<8x128xf32>
    %c1_46 = arith.constant 1 : index
    %c0_47 = arith.constant 0 : index
    %c0_48 = arith.constant 0 : index
    %130 = vector.load %arg3[%c1_46, %c0_47, %c0_48] : memref<2x32x32xbf16, #tpu.memory_space<vmem>>, vector<1x32x32xbf16>
    %131 = vector.shape_cast %130 : vector<1x32x32xbf16> to vector<32x32xbf16>
    %132 = arith.truncf %127 : vector<32x32xf32> to vector<32x32xbf16>
    %c1_49 = arith.constant 1 : index
    %c0_50 = arith.constant 0 : index
    %c0_51 = arith.constant 0 : index
    %133 = vector.load %arg2[%c1_49, %c0_50, %c0_51] : memref<2x32x128xbf16, #tpu.memory_space<vmem>>, vector<1x32x128xbf16>
    %134 = vector.shape_cast %133 : vector<1x32x128xbf16> to vector<32x128xbf16>
    %cst_52 = arith.constant dense<0.000000e+00> : vector<32x128xf32>
    %135 = tpu.matmul %132, %134, %cst_52 {dimension_numbers = #tpu.dot_dimension_numbers<[1], [0], [0], [1], [0, 0, 1, 1], [], []>} : vector<32x32xbf16>, vector<32x128xbf16>, vector<32x128xf32> -> vector<32x128xf32>
    %136 = vector.extract_strided_slice %129 {offsets = [0, 0], sizes = [1, 128], strides = [1, 1]} : vector<8x128xf32> to vector<1x128xf32>
    %137 = vector.broadcast %136 : vector<1x128xf32> to vector<32x128xf32>
    %138 = arith.addf %135, %137 : vector<32x128xf32>
    %139 = vector.extract_strided_slice %129 {offsets = [1, 0], sizes = [1, 32], strides = [1, 1]} : vector<8x128xf32> to vector<1x32xf32>
    %140 = vector.extract_strided_slice %138 {offsets = [0, 0], sizes = [32, 16], strides = [1, 1]} : vector<32x128xf32> to vector<32x16xf32>
    %141 = vector.extract_strided_slice %138 {offsets = [0, 32], sizes = [32, 16], strides = [1, 1]} : vector<32x128xf32> to vector<32x16xf32>
    %142 = vector.extract_strided_slice %138 {offsets = [0, 64], sizes = [32, 16], strides = [1, 1]} : vector<32x128xf32> to vector<32x16xf32>
    %cst_53 = arith.constant dense<0.000000e+00> : vector<32x32xf32>
    %143 = tpu.matmul %140, %141, %cst_53 {dimension_numbers = #tpu.dot_dimension_numbers<[1], [1], [0], [0], [0, 0, 1, 0], [], []>} : vector<32x16xf32>, vector<32x16xf32>, vector<32x32xf32> -> vector<32x32xf32>
    %cst_54 = arith.constant 2.500000e-01 : f32
    %144 = vector.broadcast %cst_54 : f32 to vector<32x32xf32>
    %145 = arith.mulf %143, %144 : vector<32x32xf32>
    %146 = arith.addf %145, %1 : vector<32x32xf32>
    %147 = math.exp %146 : vector<32x32xf32>
    %cst_55 = arith.constant dense<0.000000e+00> : vector<32xf32>
    %148 = vector.multi_reduction <add>, %147, %cst_55 [1] : vector<32x32xf32> to vector<32xf32>
    %149 = vector.shape_cast %148 : vector<32xf32> to vector<32x1xf32>
    %150 = tpu.reciprocal %149 {approx = true} : vector<32x1xf32> -> vector<32x1xf32>
    %151 = vector.broadcast %150 : vector<32x1xf32> to vector<32x32xf32>
    %152 = arith.mulf %147, %151 : vector<32x32xf32>
    %cst_56 = arith.constant dense<0.000000e+00> : vector<32x16xf32>
    %153 = tpu.matmul %152, %142, %cst_56 {dimension_numbers = #tpu.dot_dimension_numbers<[1], [0], [0], [1], [0, 0, 1, 1], [], []>} : vector<32x32xf32>, vector<32x16xf32>, vector<32x16xf32> -> vector<32x16xf32>
    %154 = arith.truncf %153 : vector<32x16xf32> to vector<32x16xbf16>
    %155 = vector.extract_strided_slice %131 {offsets = [0, 0], sizes = [16, 32], strides = [1, 1]} : vector<32x32xbf16> to vector<16x32xbf16>
    %cst_57 = arith.constant dense<0.000000e+00> : vector<32x32xf32>
    %156 = tpu.matmul %154, %155, %cst_57 {dimension_numbers = #tpu.dot_dimension_numbers<[1], [0], [0], [1], [0, 0, 1, 1], [], []>} : vector<32x16xbf16>, vector<16x32xbf16>, vector<32x32xf32> -> vector<32x32xf32>
    %157 = vector.broadcast %139 : vector<1x32xf32> to vector<32x32xf32>
    %158 = arith.addf %157, %156 : vector<32x32xf32>
    %159 = vector.extract_strided_slice %138 {offsets = [0, 16], sizes = [32, 16], strides = [1, 1]} : vector<32x128xf32> to vector<32x16xf32>
    %160 = vector.extract_strided_slice %138 {offsets = [0, 48], sizes = [32, 16], strides = [1, 1]} : vector<32x128xf32> to vector<32x16xf32>
    %161 = vector.extract_strided_slice %138 {offsets = [0, 80], sizes = [32, 16], strides = [1, 1]} : vector<32x128xf32> to vector<32x16xf32>
    %cst_58 = arith.constant dense<0.000000e+00> : vector<32x32xf32>
    %162 = tpu.matmul %159, %160, %cst_58 {dimension_numbers = #tpu.dot_dimension_numbers<[1], [1], [0], [0], [0, 0, 1, 0], [], []>} : vector<32x16xf32>, vector<32x16xf32>, vector<32x32xf32> -> vector<32x32xf32>
    %cst_59 = arith.constant 2.500000e-01 : f32
    %163 = vector.broadcast %cst_59 : f32 to vector<32x32xf32>
    %164 = arith.mulf %162, %163 : vector<32x32xf32>
    %165 = arith.addf %164, %1 : vector<32x32xf32>
    %166 = math.exp %165 : vector<32x32xf32>
    %cst_60 = arith.constant dense<0.000000e+00> : vector<32xf32>
    %167 = vector.multi_reduction <add>, %166, %cst_60 [1] : vector<32x32xf32> to vector<32xf32>
    %168 = vector.shape_cast %167 : vector<32xf32> to vector<32x1xf32>
    %169 = tpu.reciprocal %168 {approx = true} : vector<32x1xf32> -> vector<32x1xf32>
    %170 = vector.broadcast %169 : vector<32x1xf32> to vector<32x32xf32>
    %171 = arith.mulf %166, %170 : vector<32x32xf32>
    %cst_61 = arith.constant dense<0.000000e+00> : vector<32x16xf32>
    %172 = tpu.matmul %171, %161, %cst_61 {dimension_numbers = #tpu.dot_dimension_numbers<[1], [0], [0], [1], [0, 0, 1, 1], [], []>} : vector<32x32xf32>, vector<32x16xf32>, vector<32x16xf32> -> vector<32x16xf32>
    %173 = arith.truncf %172 : vector<32x16xf32> to vector<32x16xbf16>
    %174 = vector.extract_strided_slice %131 {offsets = [16, 0], sizes = [16, 32], strides = [1, 1]} : vector<32x32xbf16> to vector<16x32xbf16>
    %cst_62 = arith.constant dense<0.000000e+00> : vector<32x32xf32>
    %175 = tpu.matmul %173, %174, %cst_62 {dimension_numbers = #tpu.dot_dimension_numbers<[1], [0], [0], [1], [0, 0, 1, 1], [], []>} : vector<32x16xbf16>, vector<16x32xbf16>, vector<32x32xf32> -> vector<32x32xf32>
    %176 = arith.addf %158, %175 : vector<32x32xf32>
    %177 = arith.addf %127, %176 : vector<32x32xf32>
    %178 = vector.extract_strided_slice %129 {offsets = [2, 0], sizes = [1, 32], strides = [1, 1]} : vector<8x128xf32> to vector<1x32xf32>
    %179 = vector.extract_strided_slice %129 {offsets = [3, 0], sizes = [1, 32], strides = [1, 1]} : vector<8x128xf32> to vector<1x32xf32>
    %cst_63 = arith.constant dense<0.000000e+00> : vector<32xf32>
    %180 = vector.multi_reduction <add>, %177, %cst_63 [1] : vector<32x32xf32> to vector<32xf32>
    %181 = vector.shape_cast %180 : vector<32xf32> to vector<32x1xf32>
    %cst_64 = arith.constant 3.200000e+01 : f32
    %182 = vector.broadcast %cst_64 : f32 to vector<32x1xf32>
    %183 = arith.divf %181, %182 : vector<32x1xf32>
    %184 = vector.broadcast %183 : vector<32x1xf32> to vector<32x32xf32>
    %185 = arith.subf %177, %184 : vector<32x32xf32>
    %186 = arith.mulf %185, %185 : vector<32x32xf32>
    %cst_65 = arith.constant dense<0.000000e+00> : vector<32xf32>
    %187 = vector.multi_reduction <add>, %186, %cst_65 [1] : vector<32x32xf32> to vector<32xf32>
    %188 = vector.shape_cast %187 : vector<32xf32> to vector<32x1xf32>
    %cst_66 = arith.constant 3.200000e+01 : f32
    %189 = vector.broadcast %cst_66 : f32 to vector<32x1xf32>
    %190 = arith.divf %188, %189 : vector<32x1xf32>
    %191 = vector.broadcast %183 : vector<32x1xf32> to vector<32x32xf32>
    %192 = arith.subf %177, %191 : vector<32x32xf32>
    %cst_67 = arith.constant 9.99999996E-13 : f32
    %193 = vector.broadcast %cst_67 : f32 to vector<32x1xf32>
    %194 = arith.addf %190, %193 : vector<32x1xf32>
    %195 = math.rsqrt %194 : vector<32x1xf32>
    %196 = vector.broadcast %195 : vector<32x1xf32> to vector<32x32xf32>
    %197 = arith.mulf %192, %196 : vector<32x32xf32>
    %198 = vector.broadcast %178 : vector<1x32xf32> to vector<32x32xf32>
    %199 = arith.mulf %197, %198 : vector<32x32xf32>
    %200 = vector.broadcast %179 : vector<1x32xf32> to vector<32x32xf32>
    %201 = arith.addf %199, %200 : vector<32x32xf32>
    %202 = arith.truncf %201 : vector<32x32xf32> to vector<32x32xbf16>
    %c1_68 = arith.constant 1 : index
    %c0_69 = arith.constant 0 : index
    %c0_70 = arith.constant 0 : index
    %203 = vector.load %arg4[%c1_68, %c0_69, %c0_70] : memref<2x32x64xbf16, #tpu.memory_space<vmem>>, vector<1x32x64xbf16>
    %204 = vector.shape_cast %203 : vector<1x32x64xbf16> to vector<32x64xbf16>
    %cst_71 = arith.constant dense<0.000000e+00> : vector<32x64xf32>
    %205 = tpu.matmul %202, %204, %cst_71 {dimension_numbers = #tpu.dot_dimension_numbers<[1], [0], [0], [1], [0, 0, 1, 1], [], []>} : vector<32x32xbf16>, vector<32x64xbf16>, vector<32x64xf32> -> vector<32x64xf32>
    %206 = vector.extract_strided_slice %129 {offsets = [4, 0], sizes = [1, 64], strides = [1, 1]} : vector<8x128xf32> to vector<1x64xf32>
    %207 = vector.broadcast %206 : vector<1x64xf32> to vector<32x64xf32>
    %208 = arith.addf %205, %207 : vector<32x64xf32>
    %cst_72 = arith.constant 5.000000e-01 : f32
    %209 = vector.broadcast %cst_72 : f32 to vector<32x64xf32>
    %210 = arith.mulf %209, %208 : vector<32x64xf32>
    %cst_73 = arith.constant 4.471500e-02 : f32
    %211 = vector.broadcast %cst_73 : f32 to vector<32x64xf32>
    %212 = arith.mulf %211, %208 : vector<32x64xf32>
    %213 = arith.mulf %212, %208 : vector<32x64xf32>
    %214 = arith.mulf %213, %208 : vector<32x64xf32>
    %215 = arith.addf %208, %214 : vector<32x64xf32>
    %cst_74 = arith.constant 0.797884583 : f32
    %216 = vector.broadcast %cst_74 : f32 to vector<32x64xf32>
    %217 = arith.mulf %216, %215 : vector<32x64xf32>
    %218 = math.tanh %217 : vector<32x64xf32>
    %cst_75 = arith.constant 1.000000e+00 : f32
    %219 = vector.broadcast %cst_75 : f32 to vector<32x64xf32>
    %220 = arith.addf %219, %218 : vector<32x64xf32>
    %221 = arith.mulf %210, %220 : vector<32x64xf32>
    %222 = arith.truncf %221 : vector<32x64xf32> to vector<32x64xbf16>
    %c1_76 = arith.constant 1 : index
    %c0_77 = arith.constant 0 : index
    %c0_78 = arith.constant 0 : index
    %223 = vector.load %arg5[%c1_76, %c0_77, %c0_78] : memref<2x64x32xbf16, #tpu.memory_space<vmem>>, vector<1x64x32xbf16>
    %224 = vector.shape_cast %223 : vector<1x64x32xbf16> to vector<64x32xbf16>
    %cst_79 = arith.constant dense<0.000000e+00> : vector<32x32xf32>
    %225 = tpu.matmul %222, %224, %cst_79 {dimension_numbers = #tpu.dot_dimension_numbers<[1], [0], [0], [1], [0, 0, 1, 1], [], []>} : vector<32x64xbf16>, vector<64x32xbf16>, vector<32x32xf32> -> vector<32x32xf32>
    %226 = vector.extract_strided_slice %129 {offsets = [5, 0], sizes = [1, 32], strides = [1, 1]} : vector<8x128xf32> to vector<1x32xf32>
    %227 = vector.broadcast %226 : vector<1x32xf32> to vector<32x32xf32>
    %228 = arith.addf %225, %227 : vector<32x32xf32>
    %229 = arith.addf %201, %228 : vector<32x32xf32>
    %230 = vector.extract_strided_slice %129 {offsets = [6, 0], sizes = [1, 32], strides = [1, 1]} : vector<8x128xf32> to vector<1x32xf32>
    %231 = vector.extract_strided_slice %129 {offsets = [7, 0], sizes = [1, 32], strides = [1, 1]} : vector<8x128xf32> to vector<1x32xf32>
    %cst_80 = arith.constant dense<0.000000e+00> : vector<32xf32>
    %232 = vector.multi_reduction <add>, %229, %cst_80 [1] : vector<32x32xf32> to vector<32xf32>
    %233 = vector.shape_cast %232 : vector<32xf32> to vector<32x1xf32>
    %cst_81 = arith.constant 3.200000e+01 : f32
    %234 = vector.broadcast %cst_81 : f32 to vector<32x1xf32>
    %235 = arith.divf %233, %234 : vector<32x1xf32>
    %236 = vector.broadcast %235 : vector<32x1xf32> to vector<32x32xf32>
    %237 = arith.subf %229, %236 : vector<32x32xf32>
    %238 = arith.mulf %237, %237 : vector<32x32xf32>
    %cst_82 = arith.constant dense<0.000000e+00> : vector<32xf32>
    %239 = vector.multi_reduction <add>, %238, %cst_82 [1] : vector<32x32xf32> to vector<32xf32>
    %240 = vector.shape_cast %239 : vector<32xf32> to vector<32x1xf32>
    %cst_83 = arith.constant 3.200000e+01 : f32
    %241 = vector.broadcast %cst_83 : f32 to vector<32x1xf32>
    %242 = arith.divf %240, %241 : vector<32x1xf32>
    %243 = vector.broadcast %235 : vector<32x1xf32> to vector<32x32xf32>
    %244 = arith.subf %229, %243 : vector<32x32xf32>
    %cst_84 = arith.constant 9.99999996E-13 : f32
    %245 = vector.broadcast %cst_84 : f32 to vector<32x1xf32>
    %246 = arith.addf %242, %245 : vector<32x1xf32>
    %247 = math.rsqrt %246 : vector<32x1xf32>
    %248 = vector.broadcast %247 : vector<32x1xf32> to vector<32x32xf32>
    %249 = arith.mulf %244, %248 : vector<32x32xf32>
    %250 = vector.broadcast %230 : vector<1x32xf32> to vector<32x32xf32>
    %251 = arith.mulf %249, %250 : vector<32x32xf32>
    %252 = vector.broadcast %231 : vector<1x32xf32> to vector<32x32xf32>
    %253 = arith.addf %251, %252 : vector<32x32xf32>
    %254 = vector.shape_cast %127 : vector<32x32xf32> to vector<4x8x32xf32>
    %cst_85 = arith.constant dense<0.000000e+00> : vector<4x32xf32>
    %255 = vector.multi_reduction <add>, %254, %cst_85 [1] : vector<4x8x32xf32> to vector<4x32xf32>
    %cst_86 = arith.constant 8.000000e+00 : f32
    %256 = vector.broadcast %cst_86 : f32 to vector<4x32xf32>
    %257 = arith.divf %255, %256 : vector<4x32xf32>
    %258 = vector.shape_cast %253 : vector<32x32xf32> to vector<4x8x32xf32>
    %cst_87 = arith.constant dense<0.000000e+00> : vector<4x32xf32>
    %259 = vector.multi_reduction <add>, %258, %cst_87 [1] : vector<4x8x32xf32> to vector<4x32xf32>
    %cst_88 = arith.constant 8.000000e+00 : f32
    %260 = vector.broadcast %cst_88 : f32 to vector<4x32xf32>
    %261 = arith.divf %259, %260 : vector<4x32xf32>
    %262 = arith.addf %257, %261 : vector<4x32xf32>
    %cst_89 = arith.constant 5.000000e-01 : f32
    %263 = vector.broadcast %cst_89 : f32 to vector<4x32xf32>
    %264 = arith.mulf %263, %262 : vector<4x32xf32>
    %265 = vector.extract_strided_slice %264 {offsets = [0, 0], sizes = [2, 32], strides = [1, 1]} : vector<4x32xf32> to vector<2x32xf32>
    %266 = vector.extract_strided_slice %264 {offsets = [2, 0], sizes = [2, 32], strides = [1, 1]} : vector<4x32xf32> to vector<2x32xf32>
    %c0_90 = arith.constant 0 : index
    %c0_91 = arith.constant 0 : index
    %267 = vector.load %arg7[%c0_90, %c0_91] : memref<104x128xf32, #tpu.memory_space<vmem>>, vector<104x128xf32>
    %268 = vector.extract_strided_slice %267 {offsets = [0, 0], sizes = [32, 128], strides = [1, 1]} : vector<104x128xf32> to vector<32x128xf32>
    %cst_92 = arith.constant dense<0.000000e+00> : vector<2x128xf32>
    %269 = tpu.matmul %265, %268, %cst_92 {dimension_numbers = #tpu.dot_dimension_numbers<[1], [0], [0], [1], [0, 0, 1, 1], [], []>} : vector<2x32xf32>, vector<32x128xf32>, vector<2x128xf32> -> vector<2x128xf32>
    %270 = vector.extract_strided_slice %267 {offsets = [32, 0], sizes = [32, 128], strides = [1, 1]} : vector<104x128xf32> to vector<32x128xf32>
    %cst_93 = arith.constant dense<0.000000e+00> : vector<2x128xf32>
    %271 = tpu.matmul %266, %270, %cst_93 {dimension_numbers = #tpu.dot_dimension_numbers<[1], [0], [0], [1], [0, 0, 1, 1], [], []>} : vector<2x32xf32>, vector<32x128xf32>, vector<2x128xf32> -> vector<2x128xf32>
    %272 = arith.addf %269, %271 : vector<2x128xf32>
    %273 = arith.subf %265, %266 : vector<2x32xf32>
    %274 = math.absf %273 : vector<2x32xf32>
    %275 = vector.extract_strided_slice %267 {offsets = [64, 0], sizes = [32, 128], strides = [1, 1]} : vector<104x128xf32> to vector<32x128xf32>
    %cst_94 = arith.constant dense<0.000000e+00> : vector<2x128xf32>
    %276 = tpu.matmul %274, %275, %cst_94 {dimension_numbers = #tpu.dot_dimension_numbers<[1], [0], [0], [1], [0, 0, 1, 1], [], []>} : vector<2x32xf32>, vector<32x128xf32>, vector<2x128xf32> -> vector<2x128xf32>
    %277 = arith.addf %272, %276 : vector<2x128xf32>
    %278 = vector.extract_strided_slice %267 {offsets = [96, 0], sizes = [1, 128], strides = [1, 1]} : vector<104x128xf32> to vector<1x128xf32>
    %279 = vector.broadcast %278 : vector<1x128xf32> to vector<2x128xf32>
    %280 = arith.addf %277, %279 : vector<2x128xf32>
    %cst_95 = arith.constant 0.000000e+00 : f32
    %281 = vector.broadcast %cst_95 : f32 to vector<6x128xf32>
    %282 = tpu.concatenate %280, %281 in 0 : vector<2x128xf32>, vector<6x128xf32> -> vector<8x128xf32>
    %c0_96 = arith.constant 0 : index
    %c0_97 = arith.constant 0 : index
    %283 = vector.load %arg8[%c0_96, %c0_97] : memref<8x128xf32, #tpu.memory_space<vmem>>, vector<8x128xf32>
    tpu.vector_store %arg8[%c0_96, %c0_97], %282 {strides = array<i32>} : memref<8x128xf32, #tpu.memory_space<vmem>>, vector<8x128xf32>,
    return
  }
}

</mosaic_0001>

<llo_original>
// kernel: eq.8
$region0: #{eq.8}
  %s0 = inlined_call_operand.vmem [shape: s32[4,8], index: 0, kind: input, shape index: {}]
  %s1 = inlined_call_operand.vmem [shape: s32[32], index: 1, kind: output, shape index: {}]
  $region1: #{eq.8} parent=0
    #allocation0 [shape = 'u8[4096]{0}', space=vmem, size = 0x1000, scoped, tag = 'scoped mem for output reshape']
    #allocation1 [shape = 'u8[4096]{0}', space=vmem, size = 0x1000, scoped, tag = 'scoped mem for input reshape']
    %s3 = ssub.s32 16, 1
    %v4 = vld [vmem:[%s0] sm:%s3]
    %5 = vst [vmem:[#allocation1] sm:%s3] %v4
    %v6 = vld [vmem:[#allocation1] sm:$0x1]
    %vm7 = vcmask 64512
    %8 = vst.msk [vmem:[#allocation0] sm:$0x1] %vm7, %v6
    %s9 = scalar_lea.vmem [#allocation1], 3
    %v10 = vld [vmem:[%s9] sm:$0x1]
    %11 = vrot.lane.b32.xlu0 %v10, 24
    %v12 = vpop.permute.xlu0 %11
    %vm13 = vcmask 261312
    %14 = vst.msk [vmem:[#allocation0] sm:$0x1] %vm13, %v12
    %s15 = scalar_lea.vmem [#allocation1], 2
    %v16 = vld [vmem:[%s15] sm:$0x1]
    %17 = vrot.lane.b32.xlu0 %v16, 16
    %v18 = vpop.permute.xlu0 %17
    %vm19 = vcmask 195712
    %20 = vst.msk [vmem:[#allocation0] sm:$0x1] %vm19, %v18
    %s21 = scalar_lea.vmem [#allocation1], 1
    %v22 = vld [vmem:[%s21] sm:$0x1]
    %23 = vrot.lane.b32.xlu0 %v22, 8
    %v24 = vpop.permute.xlu0 %23
    %vm25 = vcmask 130112
    %26 = vst.msk [vmem:[#allocation0] sm:$0x1] %vm25, %v24
    %s28 = ssub.s32 2, 1
    %v29 = vld [vmem:[#allocation0] sm:%s28]
    %s31 = ssub.s32 2, 1
    %32 = vst [vmem:[%s1] sm:%s31] %v29

// kernel: sentence_bert_forward.1
$region0: #{sentence_bert_forward.1}
  #allocation0 [shape = 'u32[]', space=smem, size = 0x4, offset = 0x4, fixed_abs, tag = 'smem constant byte address 0x4 - core index']
  #allocation1 [shape = 'u32[72,128]{1,0:T(1,128)}', space=vmem, size = 0x9000, scoped, tag = 'internal scratch']
  %s0 = inlined_call_operand.vmem [shape: f32[32,32], index: 0, kind: input, shape index: {}]
  %s1 = inlined_call_operand.vmem [shape: f32[32,32], index: 1, kind: input, shape index: {}]
  %s2 = inlined_call_operand.vmem [shape: bf16[2,32,128], index: 2, kind: input, shape index: {}]
  %s3 = inlined_call_operand.vmem [shape: bf16[2,32,32], index: 3, kind: input, shape index: {}]
  %s4 = inlined_call_operand.vmem [shape: bf16[2,32,64], index: 4, kind: input, shape index: {}]
  %s5 = inlined_call_operand.vmem [shape: bf16[2,64,32], index: 5, kind: input, shape index: {}]
  %s6 = inlined_call_operand.vmem [shape: f32[2,8,128], index: 6, kind: input, shape index: {}]
  %s7 = inlined_call_operand.vmem [shape: f32[104,128], index: 7, kind: input, shape index: {}]
  %s8 = inlined_call_operand.vmem [shape: f32[8,128], index: 8, kind: output, shape index: {}]
  %s9 = sld [smem:[#allocation0]]
  $region42: #{sentence_bert_forward.1} parent=0
    _
  %s11 = ssub.s32 1, %s9
  %s12 = scalar_select 0, %s11, %s9
  // Predicated region
  $region2: #{sentence_bert_forward.1} parent=0 // pred_check
    _
  $region3: #{sentence_bert_forward.1} parent=0 // pred_check_branch
    %14 = sbr.rel (0) target = $region5
  $region4: #{sentence_bert_forward.1} parent=0 // pred_region
    _
  $region5: #{sentence_bert_forward.1} parent=0 // pred_fallthru
    _
  // Predicated region
  $region6: #{sentence_bert_forward.1} parent=0 // pred_check
    _
  $region7: #{sentence_bert_forward.1} parent=0 // pred_check_branch
    %16 = sbr.rel (0) target = $region9
  $region8: #{sentence_bert_forward.1} parent=0 // pred_region
    _
  $region9: #{sentence_bert_forward.1} parent=0 // pred_fallthru
    _
  // Predicated region
  $region10: #{sentence_bert_forward.1} parent=0 // pred_check
    _
  $region11: #{sentence_bert_forward.1} parent=0 // pred_check_branch
    %18 = sbr.rel (0) target = $region13
  $region12: #{sentence_bert_forward.1} parent=0 // pred_region
    _
  $region13: #{sentence_bert_forward.1} parent=0 // pred_fallthru
    _
  // Predicated region
  $region14: #{sentence_bert_forward.1} parent=0 // pred_check
    _
  $region15: #{sentence_bert_forward.1} parent=0 // pred_check_branch
    %20 = sbr.rel (0) target = $region17
  $region16: #{sentence_bert_forward.1} parent=0 // pred_region
    _
  $region17: #{sentence_bert_forward.1} parent=0 // pred_fallthru
    _
  // Predicated region
  $region18: #{sentence_bert_forward.1} parent=0 // pred_check
    _
  $region19: #{sentence_bert_forward.1} parent=0 // pred_check_branch
    %22 = sbr.rel (0) target = $region21
  $region20: #{sentence_bert_forward.1} parent=0 // pred_region
    _
  $region21: #{sentence_bert_forward.1} parent=0 // pred_fallthru
    _
  // Predicated region
  $region22: #{sentence_bert_forward.1} parent=0 // pred_check
    _
  $region23: #{sentence_bert_forward.1} parent=0 // pred_check_branch
    %24 = sbr.rel (0) target = $region25
  $region24: #{sentence_bert_forward.1} parent=0 // pred_region
    _
  $region25: #{sentence_bert_forward.1} parent=0 // pred_fallthru
    _
  // Predicated region
  $region26: #{sentence_bert_forward.1} parent=0 // pred_check
    _
  $region27: #{sentence_bert_forward.1} parent=0 // pred_check_branch
    %26 = sbr.rel (0) target = $region29
  $region28: #{sentence_bert_forward.1} parent=0 // pred_region
    _
  $region29: #{sentence_bert_forward.1} parent=0 // pred_fallthru
    _
  // Predicated region
  $region30: #{sentence_bert_forward.1} parent=0 // pred_check
    _
  $region31: #{sentence_bert_forward.1} parent=0 // pred_check_branch
    %28 = sbr.rel (0) target = $region33
  $region32: #{sentence_bert_forward.1} parent=0 // pred_region
    _
  $region33: #{sentence_bert_forward.1} parent=0 // pred_fallthru
    _
  %v30 = vld [vmem:[%s0] sm:$0xff]
  %v31 = vld [vmem:[%s0 + $0x8] sm:$0xff]
  %v32 = vld [vmem:[%s0 + $0x10] sm:$0xff]
  %v33 = vld [vmem:[%s0 + $0x18] sm:$0xff]
  %v34 = vld [vmem:[%s1] sm:$0xff]
  %v35 = vld [vmem:[%s1 + $0x8] sm:$0xff]
  %v36 = vld [vmem:[%s1 + $0x10] sm:$0xff]
  %v37 = vld [vmem:[%s1 + $0x18] sm:$0xff]
  %v38 = vld [vmem:[%s6] sm:$0xff]
  %v39 = vld [vmem:[%s3] sm:$0xf]
  %v40 = vld [vmem:[%s3 + $0x4] sm:$0xf]
  %v41 = vld [vmem:[%s3 + $0x8] sm:$0xf]
  %v42 = vld [vmem:[%s3 + $0xc] sm:$0xf]
  %v43 = vpack.c.bf16 %v31, %v30
  %v44 = vpack.c.bf16 %v33, %v32
  %v45 = vld [vmem:[%s2] sm:$0xf]
  %v46 = vld [vmem:[%s2 + $0x4] sm:$0xf]
  %v47 = vld [vmem:[%s2 + $0x8] sm:$0xf]
  %v48 = vld [vmem:[%s2 + $0xc] sm:$0xf]
  %v49 = vperm.slane %v38, 0
  %v54 = vunpack.c.l.b16 %v45
  %v55 = vunpack.c.l.b16 %v46
  %v56 = vunpack.c.l.b16 %v47
  %v57 = vunpack.c.l.b16 %v48
  %v58 = vpack.c.b16 %v55, %v54
  %v59 = vpack.c.b16 %v57, %v56
  %vm62 = vcmask 261120
  %v64 = vsel %vm62, %v43, 0
  %v67 = vsel %vm62, %v44, 0
  %69 = vmatpush.bf16.msra.mxu0 0
  %70 = vmatpush.bf16.msra.mxu0 0
  %71 = vmatpush.bf16.msra.mxu0 0
  %72 = vmatpush.bf16.msra.mxu0 0
  %73 = vmatpush.bf16.msra.mxu0 0
  %74 = vmatpush.bf16.msra.mxu0 0
  %75 = vmatpush.bf16.msra.mxu0 %v59
  %76 = vmatpush.bf16.msra.mxu0 %v58
  %77 = vmatmul.bf16.gmra.mxu0 %v64
  %v78 = vpop.f32.mrf.mxu0
  %v79 = vadd.f32 %v49, %v78
  %v80 = vpop.f32.mrf.mxu0
  %v81 = vadd.f32 %v49, %v80
  %82 = vmatmul.bf16.gmra.mxu0 %v67
  %v83 = vpop.f32.mrf.mxu0
  %v84 = vadd.f32 %v49, %v83
  %v85 = vpop.f32.mrf.mxu0
  %v86 = vadd.f32 %v49, %v85
  %87 = vdwg.mxu0
  %92 = vrot.lane.b32.xlu0 %v79, 96
  %v93 = vpop.permute.xlu0 %92
  %94 = vrot.lane.b32.xlu0 %v81, 96
  %v95 = vpop.permute.xlu0 %94
  %96 = vrot.lane.b32.xlu0 %v84, 96
  %v97 = vpop.permute.xlu0 %96
  %98 = vrot.lane.b32.xlu0 %v86, 96
  %v99 = vpop.permute.xlu0 %98
  %vm100 = vcmask 130048
  %v101 = vsel %vm100, %v79, 0
  %v103 = vsel %vm100, %v81, 0
  %v105 = vsel %vm100, %v84, 0
  %v107 = vsel %vm100, %v86, 0
  %v109 = vsel %vm100, %v93, 0
  %v111 = vsel %vm100, %v95, 0
  %v113 = vsel %vm100, %v97, 0
  %v115 = vsel %vm100, %v99, 0
  %117 = vmatpush.xpose.msra.mxu0 0.0
  %118 = vmatpush.xpose.msra.mxu0 0.0
  %119 = vmatpush.xpose.msra.mxu0 0.0
  %120 = vmatpush.xpose.msra.mxu0 0.0
  %121 = vmatpush.xpose.msra.mxu0 0.0
  %122 = vmatpush.xpose.msra.mxu0 0.0
  %123 = vmatpush.xpose.msra.mxu0 0.0
  %124 = vmatpush.xpose.msra.mxu0 0.0
  %125 = vmatpush.xpose.msra.mxu0 0.0
  %126 = vmatpush.xpose.msra.mxu0 0.0
  %127 = vmatpush.xpose.msra.mxu0 0.0
  %128 = vmatpush.xpose.msra.mxu0 0.0
  %129 = vmatpush.xpose.msra.mxu0 %v115
  %130 = vmatpush.xpose.msra.mxu0 %v113
  %131 = vmatpush.xpose.msra.mxu0 %v111
  %132 = vmatpush.xpose.msra.mxu0 %v109
  %133 = vmatmul.f32.gmra.mxu0 %v101
  %v134 = vpop.f32.mrf.mxu0
  %v135 = vadd.f32 0.0, %v134
  %136 = vmatmul.f32.gmra.mxu0 %v103
  %v137 = vpop.f32.mrf.mxu0
  %v138 = vadd.f32 0.0, %v137
  %139 = vmatmul.f32.gmra.mxu0 %v105
  %v140 = vpop.f32.mrf.mxu0
  %v141 = vadd.f32 0.0, %v140
  %142 = vmatmul.f32.gmra.mxu0 %v107
  %v143 = vpop.f32.mrf.mxu0
  %v144 = vadd.f32 0.0, %v143
  %145 = vdwg.mxu0
  %v146 = vmul.f32 %v135, 0.25
  %v147 = vmul.f32 %v138, 0.25
  %v148 = vmul.f32 %v141, 0.25
  %v149 = vmul.f32 %v144, 0.25
  %v150 = vadd.f32 %v146, %v34
  %v151 = vadd.f32 %v147, %v35
  %v152 = vadd.f32 %v148, %v36
  %v153 = vadd.f32 %v149, %v37
  %v154 = vmul.f32 %v150, 1.442695
  %v155 = vpow.pop %v154
  %v156 = vmul.f32 %v151, 1.442695
  %v157 = vpow.pop %v156
  %v158 = vmul.f32 %v152, 1.442695
  %v159 = vpow.pop %v158
  %v160 = vmul.f32 %v153, 1.442695
  %v161 = vpow.pop %v160
  %v162 = vsel %vm62, %v155, 0.0
  %163 = vadd.xlane.f32.xlu0 %v162
  %v164 = vpop.xlane.xlu0 %163
  %v165 = vsel %vm62, %v157, 0.0
  %166 = vadd.xlane.f32.xlu0 %v165
  %v167 = vpop.xlane.xlu0 %166
  %v168 = vsel %vm62, %v159, 0.0
  %169 = vadd.xlane.f32.xlu0 %v168
  %v170 = vpop.xlane.xlu0 %169
  %v171 = vsel %vm62, %v161, 0.0
  %172 = vadd.xlane.f32.xlu0 %v171
  %v173 = vpop.xlane.xlu0 %172
  %v174 = vrcp.pop %v164
  %v175 = vrcp.pop %v167
  %v176 = vrcp.pop %v170
  %v177 = vrcp.pop %v173
  %v178 = vmul.f32 %v155, %v174
  %v179 = vmul.f32 %v157, %v175
  %v180 = vmul.f32 %v159, %v176
  %v181 = vmul.f32 %v161, %v177
  %182 = vrot.lane.b32.xlu0 %v79, 64
  %v183 = vpop.permute.xlu0 %182
  %184 = vrot.lane.b32.xlu0 %v81, 64
  %v185 = vpop.permute.xlu0 %184
  %186 = vrot.lane.b32.xlu0 %v84, 64
  %v187 = vpop.permute.xlu0 %186
  %188 = vrot.lane.b32.xlu0 %v86, 64
  %v189 = vpop.permute.xlu0 %188
  %v195 = vsel %vm62, %v178, 0
  %v198 = vsel %vm62, %v179, 0
  %v201 = vsel %vm62, %v180, 0
  %v204 = vsel %vm62, %v181, 0
  %206 = vmatpush.msra.mxu0 0.0
  %207 = vmatpush.msra.mxu0 0.0
  %208 = vmatpush.msra.mxu0 0.0
  %209 = vmatpush.msra.mxu0 0.0
  %210 = vmatpush.msra.mxu0 0.0
  %211 = vmatpush.msra.mxu0 0.0
  %212 = vmatpush.msra.mxu0 0.0
  %213 = vmatpush.msra.mxu0 0.0
  %214 = vmatpush.msra.mxu0 0.0
  %215 = vmatpush.msra.mxu0 0.0
  %216 = vmatpush.msra.mxu0 0.0
  %217 = vmatpush.msra.mxu0 0.0
  %218 = vmatpush.msra.mxu0 %v189
  %219 = vmatpush.msra.mxu0 %v187
  %220 = vmatpush.msra.mxu0 %v185
  %221 = vmatpush.msra.mxu0 %v183
  %222 = vmatmul.f32.gmra.mxu0 %v195
  %v223 = vpop.f32.mrf.mxu0
  %v224 = vadd.f32 0.0, %v223
  %225 = vmatmul.f32.gmra.mxu0 %v198
  %v226 = vpop.f32.mrf.mxu0
  %v227 = vadd.f32 0.0, %v226
  %228 = vmatmul.f32.gmra.mxu0 %v201
  %v229 = vpop.f32.mrf.mxu0
  %v230 = vadd.f32 0.0, %v229
  %231 = vmatmul.f32.gmra.mxu0 %v204
  %v232 = vpop.f32.mrf.mxu0
  %v233 = vadd.f32 0.0, %v232
  %234 = vdwg.mxu0
  %v235 = vpack.c.bf16 %v227, %v224
  %v236 = vpack.c.bf16 %v233, %v230
  %v239 = vunpack.c.l.b16 %v39
  %v240 = vunpack.c.l.b16 %v40
  %v241 = vpack.c.b16 %v240, %v239
  %v244 = vsel %vm100, %v235, 0
  %v247 = vsel %vm100, %v236, 0
  %249 = vmatpush.bf16.msra.mxu0 0
  %250 = vmatpush.bf16.msra.mxu0 0
  %251 = vmatpush.bf16.msra.mxu0 0
  %252 = vmatpush.bf16.msra.mxu0 0
  %253 = vmatpush.bf16.msra.mxu0 0
  %254 = vmatpush.bf16.msra.mxu0 0
  %255 = vmatpush.bf16.msra.mxu0 0
  %256 = vmatpush.bf16.msra.mxu0 %v241
  %257 = vmatmul.bf16.gmra.mxu0 %v244
  %v258 = vpop.f32.mrf.mxu0
  %v259 = vadd.f32 0.0, %v258
  %v260 = vpop.f32.mrf.mxu0
  %v261 = vadd.f32 0.0, %v260
  %262 = vmatmul.bf16.gmra.mxu0 %v247
  %v263 = vpop.f32.mrf.mxu0
  %v264 = vadd.f32 0.0, %v263
  %v265 = vpop.f32.mrf.mxu0
  %v266 = vadd.f32 0.0, %v265
  %267 = vdwg.mxu0
  %v268 = vperm.slane %v38, 1
  %v269 = vadd.f32 %v268, %v259
  %v270 = vadd.f32 %v268, %v261
  %v271 = vadd.f32 %v268, %v264
  %v272 = vadd.f32 %v268, %v266
  %273 = vrot.lane.b32.xlu0 %v79, 112
  %v274 = vpop.permute.xlu0 %273
  %275 = vrot.lane.b32.xlu0 %v81, 112
  %v276 = vpop.permute.xlu0 %275
  %277 = vrot.lane.b32.xlu0 %v84, 112
  %v278 = vpop.permute.xlu0 %277
  %279 = vrot.lane.b32.xlu0 %v86, 112
  %v280 = vpop.permute.xlu0 %279
  %281 = vrot.lane.b32.xlu0 %v79, 80
  %v282 = vpop.permute.xlu0 %281
  %283 = vrot.lane.b32.xlu0 %v81, 80
  %v284 = vpop.permute.xlu0 %283
  %285 = vrot.lane.b32.xlu0 %v84, 80
  %v286 = vpop.permute.xlu0 %285
  %287 = vrot.lane.b32.xlu0 %v86, 80
  %v288 = vpop.permute.xlu0 %287
  %v289 = vsel %vm100, %v274, 0
  %v291 = vsel %vm100, %v276, 0
  %v293 = vsel %vm100, %v278, 0
  %v295 = vsel %vm100, %v280, 0
  %v297 = vsel %vm100, %v282, 0
  %v299 = vsel %vm100, %v284, 0
  %v301 = vsel %vm100, %v286, 0
  %v303 = vsel %vm100, %v288, 0
  %305 = vmatpush.xpose.msra.mxu0 0.0
  %306 = vmatpush.xpose.msra.mxu0 0.0
  %307 = vmatpush.xpose.msra.mxu0 0.0
  %308 = vmatpush.xpose.msra.mxu0 0.0
  %309 = vmatpush.xpose.msra.mxu0 0.0
  %310 = vmatpush.xpose.msra.mxu0 0.0
  %311 = vmatpush.xpose.msra.mxu0 0.0
  %312 = vmatpush.xpose.msra.mxu0 0.0
  %313 = vmatpush.xpose.msra.mxu0 0.0
  %314 = vmatpush.xpose.msra.mxu0 0.0
  %315 = vmatpush.xpose.msra.mxu0 0.0
  %316 = vmatpush.xpose.msra.mxu0 0.0
  %317 = vmatpush.xpose.msra.mxu0 %v303
  %318 = vmatpush.xpose.msra.mxu0 %v301
  %319 = vmatpush.xpose.msra.mxu0 %v299
  %320 = vmatpush.xpose.msra.mxu0 %v297
  %321 = vmatmul.f32.gmra.mxu0 %v289
  %v322 = vpop.f32.mrf.mxu0
  %v323 = vadd.f32 0.0, %v322
  %324 = vmatmul.f32.gmra.mxu0 %v291
  %v325 = vpop.f32.mrf.mxu0
  %v326 = vadd.f32 0.0, %v325
  %327 = vmatmul.f32.gmra.mxu0 %v293
  %v328 = vpop.f32.mrf.mxu0
  %v329 = vadd.f32 0.0, %v328
  %330 = vmatmul.f32.gmra.mxu0 %v295
  %v331 = vpop.f32.mrf.mxu0
  %v332 = vadd.f32 0.0, %v331
  %333 = vdwg.mxu0
  %v334 = vmul.f32 %v323, 0.25
  %v335 = vmul.f32 %v326, 0.25
  %v336 = vmul.f32 %v329, 0.25
  %v337 = vmul.f32 %v332, 0.25
  %v338 = vadd.f32 %v334, %v34
  %v339 = vadd.f32 %v335, %v35
  %v340 = vadd.f32 %v336, %v36
  %v341 = vadd.f32 %v337, %v37
  %v342 = vmul.f32 %v338, 1.442695
  %v343 = vpow.pop %v342
  %v344 = vmul.f32 %v339, 1.442695
  %v345 = vpow.pop %v344
  %v346 = vmul.f32 %v340, 1.442695
  %v347 = vpow.pop %v346
  %v348 = vmul.f32 %v341, 1.442695
  %v349 = vpow.pop %v348
  %v350 = vsel %vm62, %v343, 0.0
  %351 = vadd.xlane.f32.xlu0 %v350
  %v352 = vpop.xlane.xlu0 %351
  %v353 = vsel %vm62, %v345, 0.0
  %354 = vadd.xlane.f32.xlu0 %v353
  %v355 = vpop.xlane.xlu0 %354
  %v356 = vsel %vm62, %v347, 0.0
  %357 = vadd.xlane.f32.xlu0 %v356
  %v358 = vpop.xlane.xlu0 %357
  %v359 = vsel %vm62, %v349, 0.0
  %360 = vadd.xlane.f32.xlu0 %v359
  %v361 = vpop.xlane.xlu0 %360
  %v362 = vrcp.pop %v352
  %v363 = vrcp.pop %v355
  %v364 = vrcp.pop %v358
  %v365 = vrcp.pop %v361
  %v366 = vmul.f32 %v343, %v362
  %v367 = vmul.f32 %v345, %v363
  %v368 = vmul.f32 %v347, %v364
  %v369 = vmul.f32 %v349, %v365
  %370 = vrot.lane.b32.xlu0 %v79, 48
  %v371 = vpop.permute.xlu0 %370
  %372 = vrot.lane.b32.xlu0 %v81, 48
  %v373 = vpop.permute.xlu0 %372
  %374 = vrot.lane.b32.xlu0 %v84, 48
  %v375 = vpop.permute.xlu0 %374
  %376 = vrot.lane.b32.xlu0 %v86, 48
  %v377 = vpop.permute.xlu0 %376
  %v383 = vsel %vm62, %v366, 0
  %v386 = vsel %vm62, %v367, 0
  %v389 = vsel %vm62, %v368, 0
  %v392 = vsel %vm62, %v369, 0
  %394 = vmatpush.msra.mxu0 0.0
  %395 = vmatpush.msra.mxu0 0.0
  %396 = vmatpush.msra.mxu0 0.0
  %397 = vmatpush.msra.mxu0 0.0
  %398 = vmatpush.msra.mxu0 0.0
  %399 = vmatpush.msra.mxu0 0.0
  %400 = vmatpush.msra.mxu0 0.0
  %401 = vmatpush.msra.mxu0 0.0
  %402 = vmatpush.msra.mxu0 0.0
  %403 = vmatpush.msra.mxu0 0.0
  %404 = vmatpush.msra.mxu0 0.0
  %405 = vmatpush.msra.mxu0 0.0
  %406 = vmatpush.msra.mxu0 %v377
  %407 = vmatpush.msra.mxu0 %v375
  %408 = vmatpush.msra.mxu0 %v373
  %409 = vmatpush.msra.mxu0 %v371
  %410 = vmatmul.f32.gmra.mxu0 %v383
  %v411 = vpop.f32.mrf.mxu0
  %v412 = vadd.f32 0.0, %v411
  %413 = vmatmul.f32.gmra.mxu0 %v386
  %v414 = vpop.f32.mrf.mxu0
  %v415 = vadd.f32 0.0, %v414
  %416 = vmatmul.f32.gmra.mxu0 %v389
  %v417 = vpop.f32.mrf.mxu0
  %v418 = vadd.f32 0.0, %v417
  %419 = vmatmul.f32.gmra.mxu0 %v392
  %v420 = vpop.f32.mrf.mxu0
  %v421 = vadd.f32 0.0, %v420
  %422 = vdwg.mxu0
  %v423 = vpack.c.bf16 %v415, %v412
  %v424 = vpack.c.bf16 %v421, %v418
  %v427 = vunpack.c.l.b16 %v41
  %v428 = vunpack.c.l.b16 %v42
  %v429 = vpack.c.b16 %v428, %v427
  %v432 = vsel %vm100, %v423, 0
  %v435 = vsel %vm100, %v424, 0
  %437 = vmatpush.bf16.msra.mxu0 0
  %438 = vmatpush.bf16.msra.mxu0 0
  %439 = vmatpush.bf16.msra.mxu0 0
  %440 = vmatpush.bf16.msra.mxu0 0
  %441 = vmatpush.bf16.msra.mxu0 0
  %442 = vmatpush.bf16.msra.mxu0 0
  %443 = vmatpush.bf16.msra.mxu0 0
  %444 = vmatpush.bf16.msra.mxu0 %v429
  %445 = vmatmul.bf16.gmra.mxu0 %v432
  %v446 = vpop.f32.mrf.mxu0
  %v447 = vadd.f32 0.0, %v446
  %v448 = vpop.f32.mrf.mxu0
  %v449 = vadd.f32 0.0, %v448
  %450 = vmatmul.bf16.gmra.mxu0 %v435
  %v451 = vpop.f32.mrf.mxu0
  %v452 = vadd.f32 0.0, %v451
  %v453 = vpop.f32.mrf.mxu0
  %v454 = vadd.f32 0.0, %v453
  %455 = vdwg.mxu0
  %v456 = vadd.f32 %v269, %v447
  %v457 = vadd.f32 %v270, %v449
  %v458 = vadd.f32 %v271, %v452
  %v459 = vadd.f32 %v272, %v454
  %v460 = vadd.f32 %v30, %v456
  %v461 = vadd.f32 %v31, %v457
  %v462 = vadd.f32 %v32, %v458
  %v463 = vadd.f32 %v33, %v459
  %v464 = vsel %vm62, %v460, 0.0
  %465 = vadd.xlane.f32.xlu0 %v464
  %v466 = vpop.xlane.xlu0 %465
  %v467 = vsel %vm62, %v461, 0.0
  %468 = vadd.xlane.f32.xlu0 %v467
  %v469 = vpop.xlane.xlu0 %468
  %v470 = vsel %vm62, %v462, 0.0
  %471 = vadd.xlane.f32.xlu0 %v470
  %v472 = vpop.xlane.xlu0 %471
  %v473 = vsel %vm62, %v463, 0.0
  %474 = vadd.xlane.f32.xlu0 %v473
  %v475 = vpop.xlane.xlu0 %474
  %v476 = vrcp.pop 32.0
  %v477 = vmul.f32 32.0, %v476
  %v478 = vsub.f32 1.0, %v477
  %v479 = vmul.f32 %v476, %v478
  %v480 = vadd.f32 %v476, %v479
  %vm481 = vweird.f32 %v476
  %v482 = vsel %vm481, %v476, %v480
  %v483 = vmul.f32 %v466, %v482
  %v484 = vmul.f32 %v469, %v482
  %v485 = vmul.f32 %v472, %v482
  %v486 = vmul.f32 %v475, %v482
  %v487 = vsub.f32 %v460, %v483
  %v488 = vsub.f32 %v461, %v484
  %v489 = vsub.f32 %v462, %v485
  %v490 = vsub.f32 %v463, %v486
  %v491 = vmul.f32 %v487, %v487
  %v492 = vmul.f32 %v488, %v488
  %v493 = vmul.f32 %v489, %v489
  %v494 = vmul.f32 %v490, %v490
  %v495 = vsel %vm62, %v491, 0.0
  %496 = vadd.xlane.f32.xlu0 %v495
  %v497 = vpop.xlane.xlu0 %496
  %v498 = vsel %vm62, %v492, 0.0
  %499 = vadd.xlane.f32.xlu0 %v498
  %v500 = vpop.xlane.xlu0 %499
  %v501 = vsel %vm62, %v493, 0.0
  %502 = vadd.xlane.f32.xlu0 %v501
  %v503 = vpop.xlane.xlu0 %502
  %v504 = vsel %vm62, %v494, 0.0
  %505 = vadd.xlane.f32.xlu0 %v504
  %v506 = vpop.xlane.xlu0 %505
  %v507 = vmul.f32 %v497, %v482
  %v508 = vmul.f32 %v500, %v482
  %v509 = vmul.f32 %v503, %v482
  %v510 = vmul.f32 %v506, %v482
  %v511 = vadd.f32 %v507, 1e-12
  %v512 = vadd.f32 %v508, 1e-12
  %v513 = vadd.f32 %v509, 1e-12
  %v514 = vadd.f32 %v510, 1e-12
  %v515 = vrsqrt.pop %v511
  %v516 = vmul.f32 %v515, %v511
  %v517 = vmul.f32 %v516, %v515
  %v518 = vmul.f32 0.5, %v517
  %v519 = vsub.f32 1.5, %v518
  %v520 = vmul.f32 %v515, %v519
  %vm521 = vweird.f32 %v511
  %vm522 = vweird.f32 %v515
  %vm523 = vmor %vm521, %vm522
  %v524 = vsel %vm523, %v515, %v520
  %v525 = vrsqrt.pop %v512
  %v526 = vmul.f32 %v525, %v512
  %v527 = vmul.f32 %v526, %v525
  %v528 = vmul.f32 0.5, %v527
  %v529 = vsub.f32 1.5, %v528
  %v530 = vmul.f32 %v525, %v529
  %vm531 = vweird.f32 %v512
  %vm532 = vweird.f32 %v525
  %vm533 = vmor %vm531, %vm532
  %v534 = vsel %vm533, %v525, %v530
  %v535 = vrsqrt.pop %v513
  %v536 = vmul.f32 %v535, %v513
  %v537 = vmul.f32 %v536, %v535
  %v538 = vmul.f32 0.5, %v537
  %v539 = vsub.f32 1.5, %v538
  %v540 = vmul.f32 %v535, %v539
  %vm541 = vweird.f32 %v513
  %vm542 = vweird.f32 %v535
  %vm543 = vmor %vm541, %vm542
  %v544 = vsel %vm543, %v535, %v540
  %v545 = vrsqrt.pop %v514
  %v546 = vmul.f32 %v545, %v514
  %v547 = vmul.f32 %v546, %v545
  %v548 = vmul.f32 0.5, %v547
  %v549 = vsub.f32 1.5, %v548
  %v550 = vmul.f32 %v545, %v549
  %vm551 = vweird.f32 %v514
  %vm552 = vweird.f32 %v545
  %vm553 = vmor %vm551, %vm552
  %v554 = vsel %vm553, %v545, %v550
  %v555 = vmul.f32 %v487, %v524
  %v556 = vmul.f32 %v488, %v534
  %v557 = vmul.f32 %v489, %v544
  %v558 = vmul.f32 %v490, %v554
  %v559 = vperm.slane %v38, 2
  %v560 = vmul.f32 %v555, %v559
  %v561 = vmul.f32 %v556, %v559
  %v562 = vmul.f32 %v557, %v559
  %v563 = vmul.f32 %v558, %v559
  %v564 = vperm.slane %v38, 3
  %v565 = vadd.f32 %v560, %v564
  %v566 = vadd.f32 %v561, %v564
  %v567 = vadd.f32 %v562, %v564
  %v568 = vadd.f32 %v563, %v564
  %v569 = vpack.c.bf16 %v566, %v565
  %v570 = vpack.c.bf16 %v568, %v567
  %v571 = vld [vmem:[%s4] sm:$0xf]
  %v572 = vld [vmem:[%s4 + $0x4] sm:$0xf]
  %v573 = vld [vmem:[%s4 + $0x8] sm:$0xf]
  %v574 = vld [vmem:[%s4 + $0xc] sm:$0xf]
  %v575 = vperm.slane %v38, 4
  %v580 = vunpack.c.l.b16 %v571
  %v581 = vunpack.c.l.b16 %v572
  %v582 = vunpack.c.l.b16 %v573
  %v583 = vunpack.c.l.b16 %v574
  %v584 = vpack.c.b16 %v581, %v580
  %v585 = vpack.c.b16 %v583, %v582
  %v589 = vsel %vm62, %v569, 0
  %v592 = vsel %vm62, %v570, 0
  %594 = vmatpush.bf16.msra.mxu0 0
  %595 = vmatpush.bf16.msra.mxu0 0
  %596 = vmatpush.bf16.msra.mxu0 0
  %597 = vmatpush.bf16.msra.mxu0 0
  %598 = vmatpush.bf16.msra.mxu0 0
  %599 = vmatpush.bf16.msra.mxu0 0
  %600 = vmatpush.bf16.msra.mxu0 %v585
  %601 = vmatpush.bf16.msra.mxu0 %v584
  %602 = vmatmul.bf16.gmra.mxu0 %v589
  %v603 = vpop.f32.mrf.mxu0
  %v604 = vadd.f32 %v575, %v603
  %v605 = vpop.f32.mrf.mxu0
  %v606 = vadd.f32 %v575, %v605
  %607 = vmatmul.bf16.gmra.mxu0 %v592
  %v608 = vpop.f32.mrf.mxu0
  %v609 = vadd.f32 %v575, %v608
  %v610 = vpop.f32.mrf.mxu0
  %v611 = vadd.f32 %v575, %v610
  %612 = vdwg.mxu0
  %v613 = vmul.f32 %v604, 0.5
  %v614 = vmul.f32 %v606, 0.5
  %v615 = vmul.f32 %v609, 0.5
  %v616 = vmul.f32 %v611, 0.5
  %v617 = vmul.f32 %v604, 0.044715
  %v618 = vmul.f32 %v606, 0.044715
  %v619 = vmul.f32 %v609, 0.044715
  %v620 = vmul.f32 %v611, 0.044715
  %v621 = vmul.f32 %v617, %v604
  %v622 = vmul.f32 %v618, %v606
  %v623 = vmul.f32 %v619, %v609
  %v624 = vmul.f32 %v620, %v611
  %v625 = vmul.f32 %v621, %v604
  %v626 = vmul.f32 %v622, %v606
  %v627 = vmul.f32 %v623, %v609
  %v628 = vmul.f32 %v624, %v611
  %v629 = vadd.f32 %v604, %v625
  %v630 = vadd.f32 %v606, %v626
  %v631 = vadd.f32 %v609, %v627
  %v632 = vadd.f32 %v611, %v628
  %v633 = vmul.f32 %v629, 0.7978846
  %v634 = vmul.f32 %v630, 0.7978846
  %v635 = vmul.f32 %v631, 0.7978846
  %v636 = vmul.f32 %v632, 0.7978846
  %v637 = vtanh.pop %v633
  %v638 = vtanh.pop %v634
  %v639 = vtanh.pop %v635
  %v640 = vtanh.pop %v636
  %v641 = vadd.f32 %v637, 1.0
  %v642 = vadd.f32 %v638, 1.0
  %v643 = vadd.f32 %v639, 1.0
  %v644 = vadd.f32 %v640, 1.0
  %v645 = vmul.f32 %v613, %v641
  %v646 = vmul.f32 %v614, %v642
  %v647 = vmul.f32 %v615, %v643
  %v648 = vmul.f32 %v616, %v644
  %v649 = vpack.c.bf16 %v646, %v645
  %v650 = vpack.c.bf16 %v648, %v647
  %v651 = vld [vmem:[%s5] sm:$0xf]
  %v652 = vld [vmem:[%s5 + $0x4] sm:$0xf]
  %v653 = vld [vmem:[%s5 + $0x8] sm:$0xf]
  %v654 = vld [vmem:[%s5 + $0xc] sm:$0xf]
  %v655 = vld [vmem:[%s5 + $0x10] sm:$0xf]
  %v656 = vld [vmem:[%s5 + $0x14] sm:$0xf]
  %v657 = vld [vmem:[%s5 + $0x18] sm:$0xf]
  %v658 = vld [vmem:[%s5 + $0x1c] sm:$0xf]
  %v659 = vperm.slane %v38, 5
  %v668 = vunpack.c.l.b16 %v651
  %v669 = vunpack.c.l.b16 %v652
  %v670 = vunpack.c.l.b16 %v653
  %v671 = vunpack.c.l.b16 %v654
  %v672 = vunpack.c.l.b16 %v655
  %v673 = vunpack.c.l.b16 %v656
  %v674 = vunpack.c.l.b16 %v657
  %v675 = vunpack.c.l.b16 %v658
  %v676 = vpack.c.b16 %v669, %v668
  %v677 = vpack.c.b16 %v671, %v670
  %v678 = vpack.c.b16 %v673, %v672
  %v679 = vpack.c.b16 %v675, %v674
  %vm684 = vcmask 523264
  %v686 = vsel %vm684, %v649, 0
  %v689 = vsel %vm684, %v650, 0
  %691 = vmatpush.bf16.msra.mxu0 0
  %692 = vmatpush.bf16.msra.mxu0 0
  %693 = vmatpush.bf16.msra.mxu0 0
  %694 = vmatpush.bf16.msra.mxu0 0
  %695 = vmatpush.bf16.msra.mxu0 %v679
  %696 = vmatpush.bf16.msra.mxu0 %v678
  %697 = vmatpush.bf16.msra.mxu0 %v677
  %698 = vmatpush.bf16.msra.mxu0 %v676
  %699 = vmatmul.bf16.gmra.mxu0 %v686
  %v700 = vpop.f32.mrf.mxu0
  %v701 = vadd.f32 %v659, %v700
  %v702 = vpop.f32.mrf.mxu0
  %v703 = vadd.f32 %v659, %v702
  %704 = vmatmul.bf16.gmra.mxu0 %v689
  %v705 = vpop.f32.mrf.mxu0
  %v706 = vadd.f32 %v659, %v705
  %v707 = vpop.f32.mrf.mxu0
  %v708 = vadd.f32 %v659, %v707
  %709 = vdwg.mxu0
  %v710 = vadd.f32 %v565, %v701
  %v711 = vadd.f32 %v566, %v703
  %v712 = vadd.f32 %v567, %v706
  %v713 = vadd.f32 %v568, %v708
  %v714 = vsel %vm62, %v710, 0.0
  %715 = vadd.xlane.f32.xlu0 %v714
  %v716 = vpop.xlane.xlu0 %715
  %v717 = vsel %vm62, %v711, 0.0
  %718 = vadd.xlane.f32.xlu0 %v717
  %v719 = vpop.xlane.xlu0 %718
  %v720 = vsel %vm62, %v712, 0.0
  %721 = vadd.xlane.f32.xlu0 %v720
  %v722 = vpop.xlane.xlu0 %721
  %v723 = vsel %vm62, %v713, 0.0
  %724 = vadd.xlane.f32.xlu0 %v723
  %v725 = vpop.xlane.xlu0 %724
  %v726 = vmul.f32 %v716, %v482
  %v727 = vmul.f32 %v719, %v482
  %v728 = vmul.f32 %v722, %v482
  %v729 = vmul.f32 %v725, %v482
  %v730 = vsub.f32 %v710, %v726
  %v731 = vsub.f32 %v711, %v727
  %v732 = vsub.f32 %v712, %v728
  %v733 = vsub.f32 %v713, %v729
  %v734 = vmul.f32 %v730, %v730
  %v735 = vmul.f32 %v731, %v731
  %v736 = vmul.f32 %v732, %v732
  %v737 = vmul.f32 %v733, %v733
  %v738 = vsel %vm62, %v734, 0.0
  %739 = vadd.xlane.f32.xlu0 %v738
  %v740 = vpop.xlane.xlu0 %739
  %v741 = vsel %vm62, %v735, 0.0
  %742 = vadd.xlane.f32.xlu0 %v741
  %v743 = vpop.xlane.xlu0 %742
  %v744 = vsel %vm62, %v736, 0.0
  %745 = vadd.xlane.f32.xlu0 %v744
  %v746 = vpop.xlane.xlu0 %745
  %v747 = vsel %vm62, %v737, 0.0
  %748 = vadd.xlane.f32.xlu0 %v747
  %v749 = vpop.xlane.xlu0 %748
  %v750 = vmul.f32 %v740, %v482
  %v751 = vmul.f32 %v743, %v482
  %v752 = vmul.f32 %v746, %v482
  %v753 = vmul.f32 %v749, %v482
  %v754 = vadd.f32 %v750, 1e-12
  %v755 = vadd.f32 %v751, 1e-12
  %v756 = vadd.f32 %v752, 1e-12
  %v757 = vadd.f32 %v753, 1e-12
  %v758 = vrsqrt.pop %v754
  %v759 = vmul.f32 %v758, %v754
  %v760 = vmul.f32 %v759, %v758
  %v761 = vmul.f32 0.5, %v760
  %v762 = vsub.f32 1.5, %v761
  %v763 = vmul.f32 %v758, %v762
  %vm764 = vweird.f32 %v754
  %vm765 = vweird.f32 %v758
  %vm766 = vmor %vm764, %vm765
  %v767 = vsel %vm766, %v758, %v763
  %v768 = vrsqrt.pop %v755
  %v769 = vmul.f32 %v768, %v755
  %v770 = vmul.f32 %v769, %v768
  %v771 = vmul.f32 0.5, %v770
  %v772 = vsub.f32 1.5, %v771
  %v773 = vmul.f32 %v768, %v772
  %vm774 = vweird.f32 %v755
  %vm775 = vweird.f32 %v768
  %vm776 = vmor %vm774, %vm775
  %v777 = vsel %vm776, %v768, %v773
  %v778 = vrsqrt.pop %v756
  %v779 = vmul.f32 %v778, %v756
  %v780 = vmul.f32 %v779, %v778
  %v781 = vmul.f32 0.5, %v780
  %v782 = vsub.f32 1.5, %v781
  %v783 = vmul.f32 %v778, %v782
  %vm784 = vweird.f32 %v756
  %vm785 = vweird.f32 %v778
  %vm786 = vmor %vm784, %vm785
  %v787 = vsel %vm786, %v778, %v783
  %v788 = vrsqrt.pop %v757
  %v789 = vmul.f32 %v788, %v757
  %v790 = vmul.f32 %v789, %v788
  %v791 = vmul.f32 0.5, %v790
  %v792 = vsub.f32 1.5, %v791
  %v793 = vmul.f32 %v788, %v792
  %vm794 = vweird.f32 %v757
  %vm795 = vweird.f32 %v788
  %vm796 = vmor %vm794, %vm795
  %v797 = vsel %vm796, %v788, %v793
  %v798 = vmul.f32 %v730, %v767
  %v799 = vmul.f32 %v731, %v777
  %v800 = vmul.f32 %v732, %v787
  %v801 = vmul.f32 %v733, %v797
  %v802 = vperm.slane %v38, 6
  %v803 = vmul.f32 %v798, %v802
  %v804 = vmul.f32 %v799, %v802
  %v805 = vmul.f32 %v800, %v802
  %v806 = vmul.f32 %v801, %v802
  %v807 = vperm.slane %v38, 7
  %v808 = vadd.f32 %v803, %v807
  %v809 = vadd.f32 %v804, %v807
  %v810 = vadd.f32 %v805, %v807
  %v811 = vadd.f32 %v806, %v807
  %s812 = scalar_lea.vmem %s6, 8
  %v813 = vld [vmem:[%s812] sm:$0xff]
  %s814 = scalar_lea.vmem %s3, 16
  %v815 = vld [vmem:[%s814] sm:$0xf]
  %v816 = vld [vmem:[%s814 + $0x4] sm:$0xf]
  %v817 = vld [vmem:[%s814 + $0x8] sm:$0xf]
  %v818 = vld [vmem:[%s814 + $0xc] sm:$0xf]
  %v819 = vpack.c.bf16 %v809, %v808
  %v820 = vpack.c.bf16 %v811, %v810
  %s821 = scalar_lea.vmem %s2, 16
  %v822 = vld [vmem:[%s821] sm:$0xf]
  %v823 = vld [vmem:[%s821 + $0x4] sm:$0xf]
  %v824 = vld [vmem:[%s821 + $0x8] sm:$0xf]
  %v825 = vld [vmem:[%s821 + $0xc] sm:$0xf]
  %v826 = vperm.slane %v813, 0
  %v831 = vunpack.c.l.b16 %v822
  %v832 = vunpack.c.l.b16 %v823
  %v833 = vunpack.c.l.b16 %v824
  %v834 = vunpack.c.l.b16 %v825
  %v835 = vpack.c.b16 %v832, %v831
  %v836 = vpack.c.b16 %v834, %v833
  %v840 = vsel %vm62, %v819, 0
  %v843 = vsel %vm62, %v820, 0
  %845 = vmatpush.bf16.msra.mxu0 0
  %846 = vmatpush.bf16.msra.mxu0 0
  %847 = vmatpush.bf16.msra.mxu0 0
  %848 = vmatpush.bf16.msra.mxu0 0
  %849 = vmatpush.bf16.msra.mxu0 0
  %850 = vmatpush.bf16.msra.mxu0 0
  %851 = vmatpush.bf16.msra.mxu0 %v836
  %852 = vmatpush.bf16.msra.mxu0 %v835
  %853 = vmatmul.bf16.gmra.mxu0 %v840
  %v854 = vpop.f32.mrf.mxu0
  %v855 = vadd.f32 %v826, %v854
  %v856 = vpop.f32.mrf.mxu0
  %v857 = vadd.f32 %v826, %v856
  %858 = vmatmul.bf16.gmra.mxu0 %v843
  %v859 = vpop.f32.mrf.mxu0
  %v860 = vadd.f32 %v826, %v859
  %v861 = vpop.f32.mrf.mxu0
  %v862 = vadd.f32 %v826, %v861
  %863 = vdwg.mxu0
  %868 = vrot.lane.b32.xlu0 %v855, 96
  %v869 = vpop.permute.xlu0 %868
  %870 = vrot.lane.b32.xlu0 %v857, 96
  %v871 = vpop.permute.xlu0 %870
  %872 = vrot.lane.b32.xlu0 %v860, 96
  %v873 = vpop.permute.xlu0 %872
  %874 = vrot.lane.b32.xlu0 %v862, 96
  %v875 = vpop.permute.xlu0 %874
  %v876 = vsel %vm100, %v855, 0
  %v878 = vsel %vm100, %v857, 0
  %v880 = vsel %vm100, %v860, 0
  %v882 = vsel %vm100, %v862, 0
  %v884 = vsel %vm100, %v869, 0
  %v886 = vsel %vm100, %v871, 0
  %v888 = vsel %vm100, %v873, 0
  %v890 = vsel %vm100, %v875, 0
  %892 = vmatpush.xpose.msra.mxu0 0.0
  %893 = vmatpush.xpose.msra.mxu0 0.0
  %894 = vmatpush.xpose.msra.mxu0 0.0
  %895 = vmatpush.xpose.msra.mxu0 0.0
  %896 = vmatpush.xpose.msra.mxu0 0.0
  %897 = vmatpush.xpose.msra.mxu0 0.0
  %898 = vmatpush.xpose.msra.mxu0 0.0
  %899 = vmatpush.xpose.msra.mxu0 0.0
  %900 = vmatpush.xpose.msra.mxu0 0.0
  %901 = vmatpush.xpose.msra.mxu0 0.0
  %902 = vmatpush.xpose.msra.mxu0 0.0
  %903 = vmatpush.xpose.msra.mxu0 0.0
  %904 = vmatpush.xpose.msra.mxu0 %v890
  %905 = vmatpush.xpose.msra.mxu0 %v888
  %906 = vmatpush.xpose.msra.mxu0 %v886
  %907 = vmatpush.xpose.msra.mxu0 %v884
  %908 = vmatmul.f32.gmra.mxu0 %v876
  %v909 = vpop.f32.mrf.mxu0
  %v910 = vadd.f32 0.0, %v909
  %911 = vmatmul.f32.gmra.mxu0 %v878
  %v912 = vpop.f32.mrf.mxu0
  %v913 = vadd.f32 0.0, %v912
  %914 = vmatmul.f32.gmra.mxu0 %v880
  %v915 = vpop.f32.mrf.mxu0
  %v916 = vadd.f32 0.0, %v915
  %917 = vmatmul.f32.gmra.mxu0 %v882
  %v918 = vpop.f32.mrf.mxu0
  %v919 = vadd.f32 0.0, %v918
  %920 = vdwg.mxu0
  %v921 = vmul.f32 %v910, 0.25
  %v922 = vmul.f32 %v913, 0.25
  %v923 = vmul.f32 %v916, 0.25
  %v924 = vmul.f32 %v919, 0.25
  %v925 = vadd.f32 %v921, %v34
  %v926 = vadd.f32 %v922, %v35
  %v927 = vadd.f32 %v923, %v36
  %v928 = vadd.f32 %v924, %v37
  %v929 = vmul.f32 %v925, 1.442695
  %v930 = vpow.pop %v929
  %v931 = vmul.f32 %v926, 1.442695
  %v932 = vpow.pop %v931
  %v933 = vmul.f32 %v927, 1.442695
  %v934 = vpow.pop %v933
  %v935 = vmul.f32 %v928, 1.442695
  %v936 = vpow.pop %v935
  %v937 = vsel %vm62, %v930, 0.0
  %938 = vadd.xlane.f32.xlu0 %v937
  %v939 = vpop.xlane.xlu0 %938
  %v940 = vsel %vm62, %v932, 0.0
  %941 = vadd.xlane.f32.xlu0 %v940
  %v942 = vpop.xlane.xlu0 %941
  %v943 = vsel %vm62, %v934, 0.0
  %944 = vadd.xlane.f32.xlu0 %v943
  %v945 = vpop.xlane.xlu0 %944
  %v946 = vsel %vm62, %v936, 0.0
  %947 = vadd.xlane.f32.xlu0 %v946
  %v948 = vpop.xlane.xlu0 %947
  %v949 = vrcp.pop %v939
  %v950 = vrcp.pop %v942
  %v951 = vrcp.pop %v945
  %v952 = vrcp.pop %v948
  %v953 = vmul.f32 %v930, %v949
  %v954 = vmul.f32 %v932, %v950
  %v955 = vmul.f32 %v934, %v951
  %v956 = vmul.f32 %v936, %v952
  %957 = vrot.lane.b32.xlu0 %v855, 64
  %v958 = vpop.permute.xlu0 %957
  %959 = vrot.lane.b32.xlu0 %v857, 64
  %v960 = vpop.permute.xlu0 %959
  %961 = vrot.lane.b32.xlu0 %v860, 64
  %v962 = vpop.permute.xlu0 %961
  %963 = vrot.lane.b32.xlu0 %v862, 64
  %v964 = vpop.permute.xlu0 %963
  %v970 = vsel %vm62, %v953, 0
  %v973 = vsel %vm62, %v954, 0
  %v976 = vsel %vm62, %v955, 0
  %v979 = vsel %vm62, %v956, 0
  %981 = vmatpush.msra.mxu0 0.0
  %982 = vmatpush.msra.mxu0 0.0
  %983 = vmatpush.msra.mxu0 0.0
  %984 = vmatpush.msra.mxu0 0.0
  %985 = vmatpush.msra.mxu0 0.0
  %986 = vmatpush.msra.mxu0 0.0
  %987 = vmatpush.msra.mxu0 0.0
  %988 = vmatpush.msra.mxu0 0.0
  %989 = vmatpush.msra.mxu0 0.0
  %990 = vmatpush.msra.mxu0 0.0
  %991 = vmatpush.msra.mxu0 0.0
  %992 = vmatpush.msra.mxu0 0.0
  %993 = vmatpush.msra.mxu0 %v964
  %994 = vmatpush.msra.mxu0 %v962
  %995 = vmatpush.msra.mxu0 %v960
  %996 = vmatpush.msra.mxu0 %v958
  %997 = vmatmul.f32.gmra.mxu0 %v970
  %v998 = vpop.f32.mrf.mxu0
  %v999 = vadd.f32 0.0, %v998
  %1000 = vmatmul.f32.gmra.mxu0 %v973
  %v1001 = vpop.f32.mrf.mxu0
  %v1002 = vadd.f32 0.0, %v1001
  %1003 = vmatmul.f32.gmra.mxu0 %v976
  %v1004 = vpop.f32.mrf.mxu0
  %v1005 = vadd.f32 0.0, %v1004
  %1006 = vmatmul.f32.gmra.mxu0 %v979
  %v1007 = vpop.f32.mrf.mxu0
  %v1008 = vadd.f32 0.0, %v1007
  %1009 = vdwg.mxu0
  %v1010 = vpack.c.bf16 %v1002, %v999
  %v1011 = vpack.c.bf16 %v1008, %v1005
  %v1014 = vunpack.c.l.b16 %v815
  %v1015 = vunpack.c.l.b16 %v816
  %v1016 = vpack.c.b16 %v1015, %v1014
  %v1019 = vsel %vm100, %v1010, 0
  %v1022 = vsel %vm100, %v1011, 0
  %1024 = vmatpush.bf16.msra.mxu0 0
  %1025 = vmatpush.bf16.msra.mxu0 0
  %1026 = vmatpush.bf16.msra.mxu0 0
  %1027 = vmatpush.bf16.msra.mxu0 0
  %1028 = vmatpush.bf16.msra.mxu0 0
  %1029 = vmatpush.bf16.msra.mxu0 0
  %1030 = vmatpush.bf16.msra.mxu0 0
  %1031 = vmatpush.bf16.msra.mxu0 %v1016
  %1032 = vmatmul.bf16.gmra.mxu0 %v1019
  %v1033 = vpop.f32.mrf.mxu0
  %v1034 = vadd.f32 0.0, %v1033
  %v1035 = vpop.f32.mrf.mxu0
  %v1036 = vadd.f32 0.0, %v1035
  %1037 = vmatmul.bf16.gmra.mxu0 %v1022
  %v1038 = vpop.f32.mrf.mxu0
  %v1039 = vadd.f32 0.0, %v1038
  %v1040 = vpop.f32.mrf.mxu0
  %v1041 = vadd.f32 0.0, %v1040
  %1042 = vdwg.mxu0
  %v1043 = vperm.slane %v813, 1
  %v1044 = vadd.f32 %v1043, %v1034
  %v1045 = vadd.f32 %v1043, %v1036
  %v1046 = vadd.f32 %v1043, %v1039
  %v1047 = vadd.f32 %v1043, %v1041
  %1048 = vrot.lane.b32.xlu0 %v855, 112
  %v1049 = vpop.permute.xlu0 %1048
  %1050 = vrot.lane.b32.xlu0 %v857, 112
  %v1051 = vpop.permute.xlu0 %1050
  %1052 = vrot.lane.b32.xlu0 %v860, 112
  %v1053 = vpop.permute.xlu0 %1052
  %1054 = vrot.lane.b32.xlu0 %v862, 112
  %v1055 = vpop.permute.xlu0 %1054
  %1056 = vrot.lane.b32.xlu0 %v855, 80
  %v1057 = vpop.permute.xlu0 %1056
  %1058 = vrot.lane.b32.xlu0 %v857, 80
  %v1059 = vpop.permute.xlu0 %1058
  %1060 = vrot.lane.b32.xlu0 %v860, 80
  %v1061 = vpop.permute.xlu0 %1060
  %1062 = vrot.lane.b32.xlu0 %v862, 80
  %v1063 = vpop.permute.xlu0 %1062
  %v1064 = vsel %vm100, %v1049, 0
  %v1066 = vsel %vm100, %v1051, 0
  %v1068 = vsel %vm100, %v1053, 0
  %v1070 = vsel %vm100, %v1055, 0
  %v1072 = vsel %vm100, %v1057, 0
  %v1074 = vsel %vm100, %v1059, 0
  %v1076 = vsel %vm100, %v1061, 0
  %v1078 = vsel %vm100, %v1063, 0
  %1080 = vmatpush.xpose.msra.mxu0 0.0
  %1081 = vmatpush.xpose.msra.mxu0 0.0
  %1082 = vmatpush.xpose.msra.mxu0 0.0
  %1083 = vmatpush.xpose.msra.mxu0 0.0
  %1084 = vmatpush.xpose.msra.mxu0 0.0
  %1085 = vmatpush.xpose.msra.mxu0 0.0
  %1086 = vmatpush.xpose.msra.mxu0 0.0
  %1087 = vmatpush.xpose.msra.mxu0 0.0
  %1088 = vmatpush.xpose.msra.mxu0 0.0
  %1089 = vmatpush.xpose.msra.mxu0 0.0
  %1090 = vmatpush.xpose.msra.mxu0 0.0
  %1091 = vmatpush.xpose.msra.mxu0 0.0
  %1092 = vmatpush.xpose.msra.mxu0 %v1078
  %1093 = vmatpush.xpose.msra.mxu0 %v1076
  %1094 = vmatpush.xpose.msra.mxu0 %v1074
  %1095 = vmatpush.xpose.msra.mxu0 %v1072
  %1096 = vmatmul.f32.gmra.mxu0 %v1064
  %v1097 = vpop.f32.mrf.mxu0
  %v1098 = vadd.f32 0.0, %v1097
  %1099 = vmatmul.f32.gmra.mxu0 %v1066
  %v1100 = vpop.f32.mrf.mxu0
  %v1101 = vadd.f32 0.0, %v1100
  %1102 = vmatmul.f32.gmra.mxu0 %v1068
  %v1103 = vpop.f32.mrf.mxu0
  %v1104 = vadd.f32 0.0, %v1103
  %1105 = vmatmul.f32.gmra.mxu0 %v1070
  %v1106 = vpop.f32.mrf.mxu0
  %v1107 = vadd.f32 0.0, %v1106
  %1108 = vdwg.mxu0
  %v1109 = vmul.f32 %v1098, 0.25
  %v1110 = vmul.f32 %v1101, 0.25
  %v1111 = vmul.f32 %v1104, 0.25
  %v1112 = vmul.f32 %v1107, 0.25
  %v1113 = vadd.f32 %v1109, %v34
  %v1114 = vadd.f32 %v1110, %v35
  %v1115 = vadd.f32 %v1111, %v36
  %v1116 = vadd.f32 %v1112, %v37
  %v1117 = vmul.f32 %v1113, 1.442695
  %v1118 = vpow.pop %v1117
  %v1119 = vmul.f32 %v1114, 1.442695
  %v1120 = vpow.pop %v1119
  %v1121 = vmul.f32 %v1115, 1.442695
  %v1122 = vpow.pop %v1121
  %v1123 = vmul.f32 %v1116, 1.442695
  %v1124 = vpow.pop %v1123
  %v1125 = vsel %vm62, %v1118, 0.0
  %1126 = vadd.xlane.f32.xlu0 %v1125
  %v1127 = vpop.xlane.xlu0 %1126
  %v1128 = vsel %vm62, %v1120, 0.0
  %1129 = vadd.xlane.f32.xlu0 %v1128
  %v1130 = vpop.xlane.xlu0 %1129
  %v1131 = vsel %vm62, %v1122, 0.0
  %1132 = vadd.xlane.f32.xlu0 %v1131
  %v1133 = vpop.xlane.xlu0 %1132
  %v1134 = vsel %vm62, %v1124, 0.0
  %1135 = vadd.xlane.f32.xlu0 %v1134
  %v1136 = vpop.xlane.xlu0 %1135
  %v1137 = vrcp.pop %v1127
  %v1138 = vrcp.pop %v1130
  %v1139 = vrcp.pop %v1133
  %v1140 = vrcp.pop %v1136
  %v1141 = vmul.f32 %v1118, %v1137
  %v1142 = vmul.f32 %v1120, %v1138
  %v1143 = vmul.f32 %v1122, %v1139
  %v1144 = vmul.f32 %v1124, %v1140
  %1145 = vrot.lane.b32.xlu0 %v855, 48
  %v1146 = vpop.permute.xlu0 %1145
  %1147 = vrot.lane.b32.xlu0 %v857, 48
  %v1148 = vpop.permute.xlu0 %1147
  %1149 = vrot.lane.b32.xlu0 %v860, 48
  %v1150 = vpop.permute.xlu0 %1149
  %1151 = vrot.lane.b32.xlu0 %v862, 48
  %v1152 = vpop.permute.xlu0 %1151
  %v1158 = vsel %vm62, %v1141, 0
  %v1161 = vsel %vm62, %v1142, 0
  %v1164 = vsel %vm62, %v1143, 0
  %v1167 = vsel %vm62, %v1144, 0
  %1169 = vmatpush.msra.mxu0 0.0
  %1170 = vmatpush.msra.mxu0 0.0
  %1171 = vmatpush.msra.mxu0 0.0
  %1172 = vmatpush.msra.mxu0 0.0
  %1173 = vmatpush.msra.mxu0 0.0
  %1174 = vmatpush.msra.mxu0 0.0
  %1175 = vmatpush.msra.mxu0 0.0
  %1176 = vmatpush.msra.mxu0 0.0
  %1177 = vmatpush.msra.mxu0 0.0
  %1178 = vmatpush.msra.mxu0 0.0
  %1179 = vmatpush.msra.mxu0 0.0
  %1180 = vmatpush.msra.mxu0 0.0
  %1181 = vmatpush.msra.mxu0 %v1152
  %1182 = vmatpush.msra.mxu0 %v1150
  %1183 = vmatpush.msra.mxu0 %v1148
  %1184 = vmatpush.msra.mxu0 %v1146
  %1185 = vmatmul.f32.gmra.mxu0 %v1158
  %v1186 = vpop.f32.mrf.mxu0
  %v1187 = vadd.f32 0.0, %v1186
  %1188 = vmatmul.f32.gmra.mxu0 %v1161
  %v1189 = vpop.f32.mrf.mxu0
  %v1190 = vadd.f32 0.0, %v1189
  %1191 = vmatmul.f32.gmra.mxu0 %v1164
  %v1192 = vpop.f32.mrf.mxu0
  %v1193 = vadd.f32 0.0, %v1192
  %1194 = vmatmul.f32.gmra.mxu0 %v1167
  %v1195 = vpop.f32.mrf.mxu0
  %v1196 = vadd.f32 0.0, %v1195
  %1197 = vdwg.mxu0
  %v1198 = vpack.c.bf16 %v1190, %v1187
  %v1199 = vpack.c.bf16 %v1196, %v1193
  %v1202 = vunpack.c.l.b16 %v817
  %v1203 = vunpack.c.l.b16 %v818
  %v1204 = vpack.c.b16 %v1203, %v1202
  %v1207 = vsel %vm100, %v1198, 0
  %v1210 = vsel %vm100, %v1199, 0
  %1212 = vmatpush.bf16.msra.mxu0 0
  %1213 = vmatpush.bf16.msra.mxu0 0
  %1214 = vmatpush.bf16.msra.mxu0 0
  %1215 = vmatpush.bf16.msra.mxu0 0
  %1216 = vmatpush.bf16.msra.mxu0 0
  %1217 = vmatpush.bf16.msra.mxu0 0
  %1218 = vmatpush.bf16.msra.mxu0 0
  %1219 = vmatpush.bf16.msra.mxu0 %v1204
  %1220 = vmatmul.bf16.gmra.mxu0 %v1207
  %v1221 = vpop.f32.mrf.mxu0
  %v1222 = vadd.f32 0.0, %v1221
  %v1223 = vpop.f32.mrf.mxu0
  %v1224 = vadd.f32 0.0, %v1223
  %1225 = vmatmul.bf16.gmra.mxu0 %v1210
  %v1226 = vpop.f32.mrf.mxu0
  %v1227 = vadd.f32 0.0, %v1226
  %v1228 = vpop.f32.mrf.mxu0
  %v1229 = vadd.f32 0.0, %v1228
  %1230 = vdwg.mxu0
  %v1231 = vadd.f32 %v1044, %v1222
  %v1232 = vadd.f32 %v1045, %v1224
  %v1233 = vadd.f32 %v1046, %v1227
  %v1234 = vadd.f32 %v1047, %v1229
  %v1235 = vadd.f32 %v808, %v1231
  %v1236 = vadd.f32 %v809, %v1232
  %v1237 = vadd.f32 %v810, %v1233
  %v1238 = vadd.f32 %v811, %v1234
  %v1239 = vsel %vm62, %v1235, 0.0
  %1240 = vadd.xlane.f32.xlu0 %v1239
  %v1241 = vpop.xlane.xlu0 %1240
  %v1242 = vsel %vm62, %v1236, 0.0
  %1243 = vadd.xlane.f32.xlu0 %v1242
  %v1244 = vpop.xlane.xlu0 %1243
  %v1245 = vsel %vm62, %v1237, 0.0
  %1246 = vadd.xlane.f32.xlu0 %v1245
  %v1247 = vpop.xlane.xlu0 %1246
  %v1248 = vsel %vm62, %v1238, 0.0
  %1249 = vadd.xlane.f32.xlu0 %v1248
  %v1250 = vpop.xlane.xlu0 %1249
  %v1251 = vmul.f32 %v1241, %v482
  %v1252 = vmul.f32 %v1244, %v482
  %v1253 = vmul.f32 %v1247, %v482
  %v1254 = vmul.f32 %v1250, %v482
  %v1255 = vsub.f32 %v1235, %v1251
  %v1256 = vsub.f32 %v1236, %v1252
  %v1257 = vsub.f32 %v1237, %v1253
  %v1258 = vsub.f32 %v1238, %v1254
  %v1259 = vmul.f32 %v1255, %v1255
  %v1260 = vmul.f32 %v1256, %v1256
  %v1261 = vmul.f32 %v1257, %v1257
  %v1262 = vmul.f32 %v1258, %v1258
  %v1263 = vsel %vm62, %v1259, 0.0
  %1264 = vadd.xlane.f32.xlu0 %v1263
  %v1265 = vpop.xlane.xlu0 %1264
  %v1266 = vsel %vm62, %v1260, 0.0
  %1267 = vadd.xlane.f32.xlu0 %v1266
  %v1268 = vpop.xlane.xlu0 %1267
  %v1269 = vsel %vm62, %v1261, 0.0
  %1270 = vadd.xlane.f32.xlu0 %v1269
  %v1271 = vpop.xlane.xlu0 %1270
  %v1272 = vsel %vm62, %v1262, 0.0
  %1273 = vadd.xlane.f32.xlu0 %v1272
  %v1274 = vpop.xlane.xlu0 %1273
  %v1275 = vmul.f32 %v1265, %v482
  %v1276 = vmul.f32 %v1268, %v482
  %v1277 = vmul.f32 %v1271, %v482
  %v1278 = vmul.f32 %v1274, %v482
  %v1279 = vadd.f32 %v1275, 1e-12
  %v1280 = vadd.f32 %v1276, 1e-12
  %v1281 = vadd.f32 %v1277, 1e-12
  %v1282 = vadd.f32 %v1278, 1e-12
  %v1283 = vrsqrt.pop %v1279
  %v1284 = vmul.f32 %v1283, %v1279
  %v1285 = vmul.f32 %v1284, %v1283
  %v1286 = vmul.f32 0.5, %v1285
  %v1287 = vsub.f32 1.5, %v1286
  %v1288 = vmul.f32 %v1283, %v1287
  %vm1289 = vweird.f32 %v1279
  %vm1290 = vweird.f32 %v1283
  %vm1291 = vmor %vm1289, %vm1290
  %v1292 = vsel %vm1291, %v1283, %v1288
  %v1293 = vrsqrt.pop %v1280
  %v1294 = vmul.f32 %v1293, %v1280
  %v1295 = vmul.f32 %v1294, %v1293
  %v1296 = vmul.f32 0.5, %v1295
  %v1297 = vsub.f32 1.5, %v1296
  %v1298 = vmul.f32 %v1293, %v1297
  %vm1299 = vweird.f32 %v1280
  %vm1300 = vweird.f32 %v1293
  %vm1301 = vmor %vm1299, %vm1300
  %v1302 = vsel %vm1301, %v1293, %v1298
  %v1303 = vrsqrt.pop %v1281
  %v1304 = vmul.f32 %v1303, %v1281
  %v1305 = vmul.f32 %v1304, %v1303
  %v1306 = vmul.f32 0.5, %v1305
  %v1307 = vsub.f32 1.5, %v1306
  %v1308 = vmul.f32 %v1303, %v1307
  %vm1309 = vweird.f32 %v1281
  %vm1310 = vweird.f32 %v1303
  %vm1311 = vmor %vm1309, %vm1310
  %v1312 = vsel %vm1311, %v1303, %v1308
  %v1313 = vrsqrt.pop %v1282
  %v1314 = vmul.f32 %v1313, %v1282
  %v1315 = vmul.f32 %v1314, %v1313
  %v1316 = vmul.f32 0.5, %v1315
  %v1317 = vsub.f32 1.5, %v1316
  %v1318 = vmul.f32 %v1313, %v1317
  %vm1319 = vweird.f32 %v1282
  %vm1320 = vweird.f32 %v1313
  %vm1321 = vmor %vm1319, %vm1320
  %v1322 = vsel %vm1321, %v1313, %v1318
  %v1323 = vmul.f32 %v1255, %v1292
  %v1324 = vmul.f32 %v1256, %v1302
  %v1325 = vmul.f32 %v1257, %v1312
  %v1326 = vmul.f32 %v1258, %v1322
  %v1327 = vperm.slane %v813, 2
  %v1328 = vmul.f32 %v1323, %v1327
  %v1329 = vmul.f32 %v1324, %v1327
  %v1330 = vmul.f32 %v1325, %v1327
  %v1331 = vmul.f32 %v1326, %v1327
  %v1332 = vperm.slane %v813, 3
  %v1333 = vadd.f32 %v1328, %v1332
  %v1334 = vadd.f32 %v1329, %v1332
  %v1335 = vadd.f32 %v1330, %v1332
  %v1336 = vadd.f32 %v1331, %v1332
  %v1337 = vpack.c.bf16 %v1334, %v1333
  %v1338 = vpack.c.bf16 %v1336, %v1335
  %s1339 = scalar_lea.vmem %s4, 16
  %v1340 = vld [vmem:[%s1339] sm:$0xf]
  %v1341 = vld [vmem:[%s1339 + $0x4] sm:$0xf]
  %v1342 = vld [vmem:[%s1339 + $0x8] sm:$0xf]
  %v1343 = vld [vmem:[%s1339 + $0xc] sm:$0xf]
  %v1344 = vperm.slane %v813, 4
  %v1349 = vunpack.c.l.b16 %v1340
  %v1350 = vunpack.c.l.b16 %v1341
  %v1351 = vunpack.c.l.b16 %v1342
  %v1352 = vunpack.c.l.b16 %v1343
  %v1353 = vpack.c.b16 %v1350, %v1349
  %v1354 = vpack.c.b16 %v1352, %v1351
  %v1358 = vsel %vm62, %v1337, 0
  %v1361 = vsel %vm62, %v1338, 0
  %1363 = vmatpush.bf16.msra.mxu0 0
  %1364 = vmatpush.bf16.msra.mxu0 0
  %1365 = vmatpush.bf16.msra.mxu0 0
  %1366 = vmatpush.bf16.msra.mxu0 0
  %1367 = vmatpush.bf16.msra.mxu0 0
  %1368 = vmatpush.bf16.msra.mxu0 0
  %1369 = vmatpush.bf16.msra.mxu0 %v1354
  %1370 = vmatpush.bf16.msra.mxu0 %v1353
  %1371 = vmatmul.bf16.gmra.mxu0 %v1358
  %v1372 = vpop.f32.mrf.mxu0
  %v1373 = vadd.f32 %v1344, %v1372
  %v1374 = vpop.f32.mrf.mxu0
  %v1375 = vadd.f32 %v1344, %v1374
  %1376 = vmatmul.bf16.gmra.mxu0 %v1361
  %v1377 = vpop.f32.mrf.mxu0
  %v1378 = vadd.f32 %v1344, %v1377
  %v1379 = vpop.f32.mrf.mxu0
  %v1380 = vadd.f32 %v1344, %v1379
  %1381 = vdwg.mxu0
  %v1382 = vmul.f32 %v1373, 0.5
  %v1383 = vmul.f32 %v1375, 0.5
  %v1384 = vmul.f32 %v1378, 0.5
  %v1385 = vmul.f32 %v1380, 0.5
  %v1386 = vmul.f32 %v1373, 0.044715
  %v1387 = vmul.f32 %v1375, 0.044715
  %v1388 = vmul.f32 %v1378, 0.044715
  %v1389 = vmul.f32 %v1380, 0.044715
  %v1390 = vmul.f32 %v1386, %v1373
  %v1391 = vmul.f32 %v1387, %v1375
  %v1392 = vmul.f32 %v1388, %v1378
  %v1393 = vmul.f32 %v1389, %v1380
  %v1394 = vmul.f32 %v1390, %v1373
  %v1395 = vmul.f32 %v1391, %v1375
  %v1396 = vmul.f32 %v1392, %v1378
  %v1397 = vmul.f32 %v1393, %v1380
  %v1398 = vadd.f32 %v1373, %v1394
  %v1399 = vadd.f32 %v1375, %v1395
  %v1400 = vadd.f32 %v1378, %v1396
  %v1401 = vadd.f32 %v1380, %v1397
  %v1402 = vmul.f32 %v1398, 0.7978846
  %v1403 = vmul.f32 %v1399, 0.7978846
  %v1404 = vmul.f32 %v1400, 0.7978846
  %v1405 = vmul.f32 %v1401, 0.7978846
  %v1406 = vtanh.pop %v1402
  %v1407 = vtanh.pop %v1403
  %v1408 = vtanh.pop %v1404
  %v1409 = vtanh.pop %v1405
  %v1410 = vadd.f32 %v1406, 1.0
  %v1411 = vadd.f32 %v1407, 1.0
  %v1412 = vadd.f32 %v1408, 1.0
  %v1413 = vadd.f32 %v1409, 1.0
  %v1414 = vmul.f32 %v1382, %v1410
  %v1415 = vmul.f32 %v1383, %v1411
  %v1416 = vmul.f32 %v1384, %v1412
  %v1417 = vmul.f32 %v1385, %v1413
  %v1418 = vpack.c.bf16 %v1415, %v1414
  %v1419 = vpack.c.bf16 %v1417, %v1416
  %s1420 = scalar_lea.vmem %s5, 32
  %v1421 = vld [vmem:[%s1420] sm:$0xf]
  %v1422 = vld [vmem:[%s1420 + $0x4] sm:$0xf]
  %v1423 = vld [vmem:[%s1420 + $0x8] sm:$0xf]
  %v1424 = vld [vmem:[%s1420 + $0xc] sm:$0xf]
  %v1425 = vld [vmem:[%s1420 + $0x10] sm:$0xf]
  %v1426 = vld [vmem:[%s1420 + $0x14] sm:$0xf]
  %v1427 = vld [vmem:[%s1420 + $0x18] sm:$0xf]
  %v1428 = vld [vmem:[%s1420 + $0x1c] sm:$0xf]
  %v1429 = vperm.slane %v813, 5
  %v1438 = vunpack.c.l.b16 %v1421
  %v1439 = vunpack.c.l.b16 %v1422
  %v1440 = vunpack.c.l.b16 %v1423
  %v1441 = vunpack.c.l.b16 %v1424
  %v1442 = vunpack.c.l.b16 %v1425
  %v1443 = vunpack.c.l.b16 %v1426
  %v1444 = vunpack.c.l.b16 %v1427
  %v1445 = vunpack.c.l.b16 %v1428
  %v1446 = vpack.c.b16 %v1439, %v1438
  %v1447 = vpack.c.b16 %v1441, %v1440
  %v1448 = vpack.c.b16 %v1443, %v1442
  %v1449 = vpack.c.b16 %v1445, %v1444
  %v1455 = vsel %vm684, %v1418, 0
  %v1458 = vsel %vm684, %v1419, 0
  %1460 = vmatpush.bf16.msra.mxu0 0
  %1461 = vmatpush.bf16.msra.mxu0 0
  %1462 = vmatpush.bf16.msra.mxu0 0
  %1463 = vmatpush.bf16.msra.mxu0 0
  %1464 = vmatpush.bf16.msra.mxu0 %v1449
  %1465 = vmatpush.bf16.msra.mxu0 %v1448
  %1466 = vmatpush.bf16.msra.mxu0 %v1447
  %1467 = vmatpush.bf16.msra.mxu0 %v1446
  %1468 = vmatmul.bf16.gmra.mxu0 %v1455
  %v1469 = vpop.f32.mrf.mxu0
  %v1470 = vadd.f32 %v1429, %v1469
  %v1471 = vpop.f32.mrf.mxu0
  %v1472 = vadd.f32 %v1429, %v1471
  %1473 = vmatmul.bf16.gmra.mxu0 %v1458
  %v1474 = vpop.f32.mrf.mxu0
  %v1475 = vadd.f32 %v1429, %v1474
  %v1476 = vpop.f32.mrf.mxu0
  %v1477 = vadd.f32 %v1429, %v1476
  %1478 = vdwg.mxu0
  %v1479 = vadd.f32 %v1333, %v1470
  %v1480 = vadd.f32 %v1334, %v1472
  %v1481 = vadd.f32 %v1335, %v1475
  %v1482 = vadd.f32 %v1336, %v1477
  %v1483 = vsel %vm62, %v1479, 0.0
  %1484 = vadd.xlane.f32.xlu0 %v1483
  %v1485 = vpop.xlane.xlu0 %1484
  %v1486 = vsel %vm62, %v1480, 0.0
  %1487 = vadd.xlane.f32.xlu0 %v1486
  %v1488 = vpop.xlane.xlu0 %1487
  %v1489 = vsel %vm62, %v1481, 0.0
  %1490 = vadd.xlane.f32.xlu0 %v1489
  %v1491 = vpop.xlane.xlu0 %1490
  %v1492 = vsel %vm62, %v1482, 0.0
  %1493 = vadd.xlane.f32.xlu0 %v1492
  %v1494 = vpop.xlane.xlu0 %1493
  %v1495 = vmul.f32 %v1485, %v482
  %v1496 = vmul.f32 %v1488, %v482
  %v1497 = vmul.f32 %v1491, %v482
  %v1498 = vmul.f32 %v1494, %v482
  %v1499 = vsub.f32 %v1479, %v1495
  %v1500 = vsub.f32 %v1480, %v1496
  %v1501 = vsub.f32 %v1481, %v1497
  %v1502 = vsub.f32 %v1482, %v1498
  %v1503 = vmul.f32 %v1499, %v1499
  %v1504 = vmul.f32 %v1500, %v1500
  %v1505 = vmul.f32 %v1501, %v1501
  %v1506 = vmul.f32 %v1502, %v1502
  %v1507 = vsel %vm62, %v1503, 0.0
  %1508 = vadd.xlane.f32.xlu0 %v1507
  %v1509 = vpop.xlane.xlu0 %1508
  %v1510 = vsel %vm62, %v1504, 0.0
  %1511 = vadd.xlane.f32.xlu0 %v1510
  %v1512 = vpop.xlane.xlu0 %1511
  %v1513 = vsel %vm62, %v1505, 0.0
  %1514 = vadd.xlane.f32.xlu0 %v1513
  %v1515 = vpop.xlane.xlu0 %1514
  %v1516 = vsel %vm62, %v1506, 0.0
  %1517 = vadd.xlane.f32.xlu0 %v1516
  %v1518 = vpop.xlane.xlu0 %1517
  %v1519 = vmul.f32 %v1509, %v482
  %v1520 = vmul.f32 %v1512, %v482
  %v1521 = vmul.f32 %v1515, %v482
  %v1522 = vmul.f32 %v1518, %v482
  %v1523 = vadd.f32 %v1519, 1e-12
  %v1524 = vadd.f32 %v1520, 1e-12
  %v1525 = vadd.f32 %v1521, 1e-12
  %v1526 = vadd.f32 %v1522, 1e-12
  %v1527 = vrsqrt.pop %v1523
  %v1528 = vmul.f32 %v1527, %v1523
  %v1529 = vmul.f32 %v1528, %v1527
  %v1530 = vmul.f32 0.5, %v1529
  %v1531 = vsub.f32 1.5, %v1530
  %v1532 = vmul.f32 %v1527, %v1531
  %vm1533 = vweird.f32 %v1523
  %vm1534 = vweird.f32 %v1527
  %vm1535 = vmor %vm1533, %vm1534
  %v1536 = vsel %vm1535, %v1527, %v1532
  %v1537 = vrsqrt.pop %v1524
  %v1538 = vmul.f32 %v1537, %v1524
  %v1539 = vmul.f32 %v1538, %v1537
  %v1540 = vmul.f32 0.5, %v1539
  %v1541 = vsub.f32 1.5, %v1540
  %v1542 = vmul.f32 %v1537, %v1541
  %vm1543 = vweird.f32 %v1524
  %vm1544 = vweird.f32 %v1537
  %vm1545 = vmor %vm1543, %vm1544
  %v1546 = vsel %vm1545, %v1537, %v1542
  %v1547 = vrsqrt.pop %v1525
  %v1548 = vmul.f32 %v1547, %v1525
  %v1549 = vmul.f32 %v1548, %v1547
  %v1550 = vmul.f32 0.5, %v1549
  %v1551 = vsub.f32 1.5, %v1550
  %v1552 = vmul.f32 %v1547, %v1551
  %vm1553 = vweird.f32 %v1525
  %vm1554 = vweird.f32 %v1547
  %vm1555 = vmor %vm1553, %vm1554
  %v1556 = vsel %vm1555, %v1547, %v1552
  %v1557 = vrsqrt.pop %v1526
  %v1558 = vmul.f32 %v1557, %v1526
  %v1559 = vmul.f32 %v1558, %v1557
  %v1560 = vmul.f32 0.5, %v1559
  %v1561 = vsub.f32 1.5, %v1560
  %v1562 = vmul.f32 %v1557, %v1561
  %vm1563 = vweird.f32 %v1526
  %vm1564 = vweird.f32 %v1557
  %vm1565 = vmor %vm1563, %vm1564
  %v1566 = vsel %vm1565, %v1557, %v1562
  %v1567 = vmul.f32 %v1499, %v1536
  %v1568 = vmul.f32 %v1500, %v1546
  %v1569 = vmul.f32 %v1501, %v1556
  %v1570 = vmul.f32 %v1502, %v1566
  %v1571 = vperm.slane %v813, 6
  %v1572 = vmul.f32 %v1567, %v1571
  %v1573 = vmul.f32 %v1568, %v1571
  %v1574 = vmul.f32 %v1569, %v1571
  %v1575 = vmul.f32 %v1570, %v1571
  %v1576 = vperm.slane %v813, 7
  %v1577 = vadd.f32 %v1572, %v1576
  %v1578 = vadd.f32 %v1573, %v1576
  %v1579 = vadd.f32 %v1574, %v1576
  %v1580 = vadd.f32 %v1575, %v1576
  %v1581 = vsel %vm62, %v808, 0.0
  %v1582 = vrot.slane %v1581, 4
  %v1583 = vadd.f32 %v1581, %v1582
  %v1584 = vrot.slane %v1583, 2
  %v1585 = vadd.f32 %v1583, %v1584
  %v1586 = vrot.slane %v1585, 1
  %v1587 = vadd.f32 %v1585, %v1586
  %v1588 = vsel %vm62, %v809, 0.0
  %v1589 = vrot.slane %v1588, 4
  %v1590 = vadd.f32 %v1588, %v1589
  %v1591 = vrot.slane %v1590, 2
  %v1592 = vadd.f32 %v1590, %v1591
  %v1593 = vrot.slane %v1592, 1
  %v1594 = vadd.f32 %v1592, %v1593
  %v1595 = vsel %vm62, %v810, 0.0
  %v1596 = vrot.slane %v1595, 4
  %v1597 = vadd.f32 %v1595, %v1596
  %v1598 = vrot.slane %v1597, 2
  %v1599 = vadd.f32 %v1597, %v1598
  %v1600 = vrot.slane %v1599, 1
  %v1601 = vadd.f32 %v1599, %v1600
  %v1602 = vsel %vm62, %v811, 0.0
  %v1603 = vrot.slane %v1602, 4
  %v1604 = vadd.f32 %v1602, %v1603
  %v1605 = vrot.slane %v1604, 2
  %v1606 = vadd.f32 %v1604, %v1605
  %v1607 = vrot.slane %v1606, 1
  %v1608 = vadd.f32 %v1606, %v1607
  %v1609 = vrcp.pop 8.0
  %v1610 = vmul.f32 8.0, %v1609
  %v1611 = vsub.f32 1.0, %v1610
  %v1612 = vmul.f32 %v1609, %v1611
  %v1613 = vadd.f32 %v1609, %v1612
  %vm1614 = vweird.f32 %v1609
  %v1615 = vsel %vm1614, %v1609, %v1613
  %v1616 = vmul.f32 %v1587, %v1615
  %v1617 = vmul.f32 %v1594, %v1615
  %v1618 = vmul.f32 %v1601, %v1615
  %v1619 = vmul.f32 %v1608, %v1615
  %v1620 = vsel %vm62, %v1577, 0.0
  %v1621 = vrot.slane %v1620, 4
  %v1622 = vadd.f32 %v1620, %v1621
  %v1623 = vrot.slane %v1622, 2
  %v1624 = vadd.f32 %v1622, %v1623
  %v1625 = vrot.slane %v1624, 1
  %v1626 = vadd.f32 %v1624, %v1625
  %v1627 = vsel %vm62, %v1578, 0.0
  %v1628 = vrot.slane %v1627, 4
  %v1629 = vadd.f32 %v1627, %v1628
  %v1630 = vrot.slane %v1629, 2
  %v1631 = vadd.f32 %v1629, %v1630
  %v1632 = vrot.slane %v1631, 1
  %v1633 = vadd.f32 %v1631, %v1632
  %v1634 = vsel %vm62, %v1579, 0.0
  %v1635 = vrot.slane %v1634, 4
  %v1636 = vadd.f32 %v1634, %v1635
  %v1637 = vrot.slane %v1636, 2
  %v1638 = vadd.f32 %v1636, %v1637
  %v1639 = vrot.slane %v1638, 1
  %v1640 = vadd.f32 %v1638, %v1639
  %v1641 = vsel %vm62, %v1580, 0.0
  %v1642 = vrot.slane %v1641, 4
  %v1643 = vadd.f32 %v1641, %v1642
  %v1644 = vrot.slane %v1643, 2
  %v1645 = vadd.f32 %v1643, %v1644
  %v1646 = vrot.slane %v1645, 1
  %v1647 = vadd.f32 %v1645, %v1646
  %v1648 = vmul.f32 %v1626, %v1615
  %v1649 = vmul.f32 %v1633, %v1615
  %v1650 = vmul.f32 %v1640, %v1615
  %v1651 = vmul.f32 %v1647, %v1615
  %v1652 = vadd.f32 %v1616, %v1648
  %v1653 = vadd.f32 %v1617, %v1649
  %v1654 = vadd.f32 %v1618, %v1650
  %v1655 = vadd.f32 %v1619, %v1651
  %v1656 = vmul.f32 %v1652, 0.5
  %v1657 = vmul.f32 %v1653, 0.5
  %v1658 = vmul.f32 %v1654, 0.5
  %v1659 = vmul.f32 %v1655, 0.5
  %v1660 = vld [vmem:[%s7] sm:$0xff]
  %v1661 = vld [vmem:[%s7 + $0x8] sm:$0xff]
  %v1662 = vld [vmem:[%s7 + $0x10] sm:$0xff]
  %v1663 = vld [vmem:[%s7 + $0x18] sm:$0xff]
  %v1664 = vld [vmem:[%s7 + $0x20] sm:$0xff]
  %v1665 = vld [vmem:[%s7 + $0x28] sm:$0xff]
  %v1666 = vld [vmem:[%s7 + $0x30] sm:$0xff]
  %v1667 = vld [vmem:[%s7 + $0x38] sm:$0xff]
  %v1668 = vld [vmem:[%s7 + $0x40] sm:$0xff]
  %v1669 = vld [vmem:[%s7 + $0x48] sm:$0xff]
  %v1670 = vld [vmem:[%s7 + $0x50] sm:$0xff]
  %v1671 = vld [vmem:[%s7 + $0x58] sm:$0xff]
  %v1672 = vld [vmem:[%s7 + $0x60] sm:$0xff]
  %vm1675 = vcmask 1041409
  %v1676 = vsel %vm1675, %v1659, %v1658
  %v1677 = vsel %vm62, %v1676, 0
  %1679 = vmatpush.msra.mxu0 0.0
  %1680 = vmatpush.msra.mxu0 0.0
  %1681 = vmatpush.msra.mxu0 0.0
  %1682 = vmatpush.msra.mxu0 0.0
  %1683 = vmatpush.msra.mxu0 0.0
  %1684 = vmatpush.msra.mxu0 0.0
  %1685 = vmatpush.msra.mxu0 0.0
  %1686 = vmatpush.msra.mxu0 0.0
  %1687 = vmatpush.msra.mxu0 0.0
  %1688 = vmatpush.msra.mxu0 0.0
  %1689 = vmatpush.msra.mxu0 0.0
  %1690 = vmatpush.msra.mxu0 0.0
  %1691 = vmatpush.msra.mxu0 %v1667
  %1692 = vmatpush.msra.mxu0 %v1666
  %1693 = vmatpush.msra.mxu0 %v1665
  %1694 = vmatpush.msra.mxu0 %v1664
  %1695 = vmatmul.f32.gmra.mxu0 %v1677
  %v1696 = vpop.f32.mrf.mxu0
  %v1697 = vadd.f32 0.0, %v1696
  %1698 = vdwg.mxu0
  %v1701 = vsel %vm1675, %v1657, %v1656
  %v1702 = vsel %vm62, %v1701, 0
  %1704 = vmatpush.msra.mxu0 0.0
  %1705 = vmatpush.msra.mxu0 0.0
  %1706 = vmatpush.msra.mxu0 0.0
  %1707 = vmatpush.msra.mxu0 0.0
  %1708 = vmatpush.msra.mxu0 0.0
  %1709 = vmatpush.msra.mxu0 0.0
  %1710 = vmatpush.msra.mxu0 0.0
  %1711 = vmatpush.msra.mxu0 0.0
  %1712 = vmatpush.msra.mxu0 0.0
  %1713 = vmatpush.msra.mxu0 0.0
  %1714 = vmatpush.msra.mxu0 0.0
  %1715 = vmatpush.msra.mxu0 0.0
  %1716 = vmatpush.msra.mxu0 %v1663
  %1717 = vmatpush.msra.mxu0 %v1662
  %1718 = vmatpush.msra.mxu0 %v1661
  %1719 = vmatpush.msra.mxu0 %v1660
  %1720 = vmatmul.f32.gmra.mxu0 %v1702
  %v1721 = vpop.f32.mrf.mxu0
  %v1722 = vadd.f32 %v1697, %v1721
  %1723 = vdwg.mxu0
  %v1724 = vsub.f32 %v1656, %v1658
  %v1725 = vsub.f32 %v1657, %v1659
  %v1726 = vand.u32 2147483647, %v1724
  %v1727 = vand.u32 2147483647, %v1725
  %v1730 = vsel %vm1675, %v1727, %v1726
  %v1731 = vsel %vm62, %v1730, 0
  %1733 = vmatpush.msra.mxu0 0.0
  %1734 = vmatpush.msra.mxu0 0.0
  %1735 = vmatpush.msra.mxu0 0.0
  %1736 = vmatpush.msra.mxu0 0.0
  %1737 = vmatpush.msra.mxu0 0.0
  %1738 = vmatpush.msra.mxu0 0.0
  %1739 = vmatpush.msra.mxu0 0.0
  %1740 = vmatpush.msra.mxu0 0.0
  %1741 = vmatpush.msra.mxu0 0.0
  %1742 = vmatpush.msra.mxu0 0.0
  %1743 = vmatpush.msra.mxu0 0.0
  %1744 = vmatpush.msra.mxu0 0.0
  %1745 = vmatpush.msra.mxu0 %v1671
  %1746 = vmatpush.msra.mxu0 %v1670
  %1747 = vmatpush.msra.mxu0 %v1669
  %1748 = vmatpush.msra.mxu0 %v1668
  %1749 = vmatmul.f32.gmra.mxu0 %v1731
  %v1750 = vpop.f32.mrf.mxu0
  %v1751 = vadd.f32 0.0, %v1750
  %1752 = vdwg.mxu0
  %v1753 = vadd.f32 %v1722, %v1751
  %v1754 = vperm.slane %v1672, 0
  %v1755 = vadd.f32 %v1753, %v1754
  %vm1756 = vcmask 1041408
  %v1757 = vsel %vm1756, %v1755, 0.0
  %1758 = vst [vmem:[%s8] sm:$0xff] %v1757
  // Predicated region
  $region34: #{sentence_bert_forward.1} parent=0 // pred_check
    _
  $region35: #{sentence_bert_forward.1} parent=0 // pred_check_branch
    %1760 = sbr.rel (0) target = $region37
  $region36: #{sentence_bert_forward.1} parent=0 // pred_region
    _
  $region37: #{sentence_bert_forward.1} parent=0 // pred_fallthru
    _
  // Predicated region
  $region38: #{sentence_bert_forward.1} parent=0 // pred_check
    _
  $region39: #{sentence_bert_forward.1} parent=0 // pred_check_branch
    %1762 = sbr.rel (0) target = $region41
  $region40: #{sentence_bert_forward.1} parent=0 // pred_region
    _
  $region41: #{sentence_bert_forward.1} parent=0 // pred_fallthru
    _

</llo_original>
